<compile_context>
chip_gen: v6e
topology: v6e:2x2x1
jax: 0.10.0
libtpu: 0.0.40
codegen_flags: <defaults>
</compile_context>

<pallas_src>
import functools

import jax
import jax.numpy as jnp
from jax.experimental import pallas as pl
from jax.experimental.pallas import tpu as pltpu


# ----------------------------- kernel ---------------------------------------


def vae_kernel(x_ref, eps_ref,
               w1_ref, b1_ref, w2_ref, b2_ref, wh_ref, bh_ref,
               wd1_ref, bd1_ref, wd2_ref, bd2_ref, wd3_ref, bd3_ref,
               recon_ref, stats_ref, *, latent_pad):
    def dot_bf16(a, w_ref):
        # Weights already live in VMEM as bf16; cast the activation only.
        return jnp.dot(a.astype(jnp.bfloat16), w_ref[...],
                       preferred_element_type=jnp.float32)

    def leaky(v):
        return jnp.where(v >= 0, v, 0.2 * v)

    x = x_ref[...]

    # ---- encoder ----
    h = leaky(dot_bf16(x, w1_ref) + b1_ref[...])
    h = leaky(dot_bf16(h, w2_ref) + b2_ref[...])

    # ---- fused mu | log_var head: a single MXU push ----
    heads = dot_bf16(h, wh_ref) + bh_ref[...]          # (tb, 2*latent_pad)
    mu = heads[:, :latent_pad]
    log_var = heads[:, latent_pad:]

    # ---- reparameterize (eps supplied by the wrapper) ----
    z = mu + eps_ref[...] * jnp.exp(0.5 * log_var)

    # ---- decoder ----
    d = leaky(dot_bf16(z, wd1_ref) + bd1_ref[...])
    d = leaky(dot_bf16(d, wd2_ref) + bd2_ref[...])
    recon = jnp.tanh(dot_bf16(d, wd3_ref) + bd3_ref[...])

    recon_ref[...] = recon
    # 128-aligned slice stores (latent_pad % 128 == 0) -> plain unmasked vst.
    stats_ref[:, :2 * latent_pad] = heads
    stats_ref[:, 2 * latent_pad:] = z


# ----------------------------- parameters -----------------------------------


def init_vae_params(key, input_dim, hidden_dim, latent_dim):
    """Deterministic synthetic parameters. Weights stored as (in, out) = W.T."""
    h2 = hidden_dim // 2
    dims = [
        ("w1", (input_dim, hidden_dim)), ("b1", (1, hidden_dim)),
        ("w2", (hidden_dim, h2)),        ("b2", (1, h2)),
        ("wmu", (h2, latent_dim)),       ("bmu", (1, latent_dim)),
        ("wlv", (h2, latent_dim)),       ("blv", (1, latent_dim)),
        ("wd1", (latent_dim, h2)),       ("bd1", (1, h2)),
        ("wd2", (h2, hidden_dim)),       ("bd2", (1, hidden_dim)),
        ("wd3", (hidden_dim, input_dim)),("bd3", (1, input_dim)),
    ]
    params = {}
    keys = jax.random.split(key, len(dims))
    for k, (name, shape) in zip(keys, dims):
        fan_in = shape[0] if name.startswith("w") else shape[1]
        scale = 1.0 / jnp.sqrt(jnp.float32(fan_in))
        params[name] = scale * jax.random.normal(k, shape, dtype=jnp.float32)
    return params


def _round_up(n, m):
    return ((n + m - 1) // m) * m


def _pad2(a, rows, cols):
    r, c = a.shape
    return jnp.pad(a, ((0, rows - r), (0, cols - c)))


def prepare_vae_params(params):
    """One-time prep: zero-pad feature dims to 128 multiples, fuse the
    mu|log_var head, and cast matmul weights to bf16 (biases stay f32)."""
    input_dim, hidden_dim = params["w1"].shape
    h2 = params["w2"].shape[1]
    latent_dim = params["wmu"].shape[1]

    dp = _round_up(input_dim, 128)
    hp = _round_up(hidden_dim, 128)
    h2p = _round_up(h2, 128)
    lp = _round_up(latent_dim, 128)

    wh = _pad2(
        jnp.concatenate([_pad2(params["wmu"], h2, lp),
                         _pad2(params["wlv"], h2, lp)], axis=1),
        h2p, 2 * lp).astype(jnp.bfloat16)
    bh = jnp.concatenate([_pad2(params["bmu"], 1, lp),
                          _pad2(params["blv"], 1, lp)], axis=1
                         ).astype(jnp.float32)

    weights = [
        _pad2(params["w1"], dp, hp).astype(jnp.bfloat16),
        _pad2(params["b1"], 1, hp).astype(jnp.float32),
        _pad2(params["w2"], hp, h2p).astype(jnp.bfloat16),
        _pad2(params["b2"], 1, h2p).astype(jnp.float32),
        wh, bh,
        _pad2(params["wd1"], lp, h2p).astype(jnp.bfloat16),
        _pad2(params["bd1"], 1, h2p).astype(jnp.float32),
        _pad2(params["wd2"], h2p, hp).astype(jnp.bfloat16),
        _pad2(params["bd2"], 1, hp).astype(jnp.float32),
        _pad2(params["wd3"], hp, dp).astype(jnp.bfloat16),
        _pad2(params["bd3"], 1, dp).astype(jnp.float32),
    ]
    dims = dict(input_dim=input_dim, latent_dim=latent_dim,
                dp=dp, hp=hp, h2p=h2p, lp=lp)
    return {"weights": weights, "dims": dims}


# ----------------------------- wrapper ---------------------------------------


def _pick_batch_tile(batch, max_tb):
    """Largest 8-aligned tile <= max_tb that divides batch, preferring >=2 grid
    steps (feeds both v7x TensorCores). Falls back to one full-extent tile."""
    if batch <= 8 or batch % 8 != 0:
        return batch
    candidates = [t for t in range(8, min(batch // 2, max_tb) + 1, 8)
                  if batch % t == 0]
    if candidates:
        return max(candidates)
    return batch


def vae_forward(x, prepared, key):
    dims = prepared["dims"]
    weights = prepared["weights"]
    batch, input_dim = x.shape
    assert input_dim == dims["input_dim"]
    dp, hp, h2p, lp = dims["dp"], dims["hp"], dims["h2p"], dims["lp"]
    latent_dim = dims["latent_dim"]

    x_p = jnp.pad(x.astype(jnp.float32), ((0, 0), (0, dp - input_dim)))
    eps = jax.random.normal(key, (batch, lp), dtype=jnp.float32)

    weight_bytes = sum(int(w.size) * w.dtype.itemsize for w in weights)
    act_row_bytes = 4 * (dp + lp + dp + 3 * lp)   # x + eps + recon + stats (f32)

    # Per-generation VMEM budget (v5e/v6e: 128 MiB, v7x: 64 MiB per TC).
    try:
        vmem_cap = int(pltpu.get_tpu_info().vmem_capacity_bytes)
    except Exception:
        vmem_cap = 64 << 20
    big_vmem = vmem_cap >= (128 << 20)
    budget = (100 << 20) if big_vmem else (44 << 20)
    headroom = 4 << 20

    max_tb = (budget - 2 * weight_bytes - headroom) // (2 * act_row_bytes)
    max_tb = int(max(8, min(max_tb, 1024 if big_vmem else 256)))
    max_tb -= max_tb % 8
    tb = _pick_batch_tile(batch, max_tb)
    grid = (batch // tb,)

    def act_spec(d):
        return pl.BlockSpec((tb, d), lambda i: (i, 0))

    def resident_spec(shape, single_buffered):
        if single_buffered:
            # Invariant weights: index_map never changes -> one buffer suffices.
            return pl.BlockSpec(shape, lambda i: (0, 0),
                                pipeline_mode=pl.Buffered(1))
        return pl.BlockSpec(shape, lambda i: (0, 0))

    out_shapes = (
        jax.ShapeDtypeStruct((batch, dp), jnp.float32),       # reconstruction
        jax.ShapeDtypeStruct((batch, 3 * lp), jnp.float32),   # [mu|logvar|z]
    )
    out_specs = (act_spec(dp), act_spec(3 * lp))

    # Advisory cost estimate for the XLA scheduler.
    layer_dims = [(dp, hp), (hp, h2p), (h2p, 2 * lp),
                  (lp, h2p), (h2p, hp), (hp, dp)]
    flops = 2 * batch * sum(a * b for a, b in layer_dims)
    transcendentals = batch * (lp + dp)
    cost = pl.CostEstimate(flops=flops, transcendentals=transcendentals,
                           bytes_accessed=weight_bytes + batch * act_row_bytes)

    # Real-footprint VMEM limit (conservatively assumes double-buffered weights
    # so the no-Buffered fallback also fits), capped per generation.
    vmem_limit = 2 * weight_bytes + 2 * tb * act_row_bytes + headroom
    vmem_limit = int(min(max(vmem_limit, 4 << 20), budget))

    kernel = functools.partial(vae_kernel, latent_pad=lp)

    def build(single_buffered):
        in_specs = ([act_spec(dp), act_spec(lp)]
                    + [resident_spec(w.shape, single_buffered) for w in weights])
        return pl.pallas_call(
            kernel,
            out_shape=out_shapes,
            grid_spec=pltpu.PrefetchScalarGridSpec(
                num_scalar_prefetch=0,
                grid=grid,
                in_specs=in_specs,
                out_specs=out_specs,
            ),
            compiler_params=pltpu.CompilerParams(
                dimension_semantics=("parallel",),
                vmem_limit_bytes=vmem_limit,
            ),
            cost_estimate=cost,
        )

    use_single_buffered = hasattr(pl, "Buffered")
    try:
        recon_p, stats_p = build(use_single_buffered)(x_p, eps, *weights)
    except Exception:
        if not use_single_buffered:
            raise
        # Fallback: this build / interpret path rejected single-buffered
        # pipeline_mode on the invariant weights; use default buffering.
        recon_p, stats_p = build(False)(x_p, eps, *weights)

    recon = recon_p[:, :input_dim]
    mu = stats_p[:, :latent_dim]
    log_var = stats_p[:, lp:lp + latent_dim]
    z = stats_p[:, 2 * lp:2 * lp + latent_dim]
    return recon, mu, log_var, z


# ----------------------------- demo / checks ---------------------------------


if __name__ == "__main__":
    batch, input_dim, hidden_dim, latent_dim = 8, 32, 32, 8

    key = jax.random.PRNGKey(0)
    k_x, k_params, k_eps = jax.random.split(key, 3)

    x = jax.random.normal(k_x, (batch, input_dim), dtype=jnp.float32)
    params = init_vae_params(k_params, input_dim, hidden_dim, latent_dim)
    prepared = prepare_vae_params(params)

    recon, mu, log_var, z = vae_forward(x, prepared, k_eps)
    jax.block_until_ready((recon, mu, log_var, z))

    # ---- correctness vs pure-JAX reference (same bf16 matmul operands, same
    # eps as the kernel: identical key/shape, first `latent_dim` columns) ----
    lp = prepared["dims"]["lp"]
    eps = jax.random.normal(k_eps, (batch, lp), dtype=jnp.float32)[:, :latent_dim]

    def leaky(v):
        return jnp.where(v >= 0, v, 0.2 * v)

    def mm(a, w):
        return jnp.dot(a.astype(jnp.bfloat16), w.astype(jnp.bfloat16),
                       preferred_element_type=jnp.float32)

    h = leaky(mm(x, params["w1"]) + params["b1"])
    h = leaky(mm(h, params["w2"]) + params["b2"])
    mu_ref = mm(h, params["wmu"]) + params["bmu"]
    lv_ref = mm(h, params["wlv"]) + params["blv"]
    z_ref = mu_ref + eps * jnp.exp(0.5 * lv_ref)
    d = leaky(mm(z_ref, params["wd1"]) + params["bd1"])
    d = leaky(mm(d, params["wd2"]) + params["bd2"])
    recon_ref = jnp.tanh(mm(d, params["wd3"]) + params["bd3"])

    assert bool(jnp.all(jnp.isfinite(recon)))
    assert jnp.allclose(mu, mu_ref, atol=5e-3, rtol=5e-3)
    assert jnp.allclose(log_var, lv_ref, atol=5e-3, rtol=5e-3)
    assert jnp.allclose(z, z_ref, atol=5e-3, rtol=5e-3)
    assert jnp.allclose(recon, recon_ref, atol=5e-3, rtol=5e-3)

    print("KERNEL_OK")
</pallas_src>

<mosaic_0001>
module attributes {stable_mosaic.version = 11 : i64} {
  func.func @vae_kernel(%arg0: i32, %arg1: memref<8x128xf32, #tpu.memory_space<vmem>>, %arg2: memref<8x128xf32, #tpu.memory_space<vmem>>, %arg3: memref<128x128xbf16, #tpu.memory_space<vmem>>, %arg4: memref<1x128xf32, #tpu.memory_space<vmem>>, %arg5: memref<128x128xbf16, #tpu.memory_space<vmem>>, %arg6: memref<1x128xf32, #tpu.memory_space<vmem>>, %arg7: memref<128x256xbf16, #tpu.memory_space<vmem>>, %arg8: memref<1x256xf32, #tpu.memory_space<vmem>>, %arg9: memref<128x128xbf16, #tpu.memory_space<vmem>>, %arg10: memref<1x128xf32, #tpu.memory_space<vmem>>, %arg11: memref<128x128xbf16, #tpu.memory_space<vmem>>, %arg12: memref<1x128xf32, #tpu.memory_space<vmem>>, %arg13: memref<128x128xbf16, #tpu.memory_space<vmem>>, %arg14: memref<1x128xf32, #tpu.memory_space<vmem>>, %arg15: memref<8x128xf32, #tpu.memory_space<vmem>>, %arg16: memref<8x384xf32, #tpu.memory_space<vmem>>) attributes {dimension_semantics = [#tpu.dimension_semantics<parallel>], iteration_bounds = array<i64: 1>, scalar_prefetch = 0 : i64, scratch_operands = 0 : i64, tpu.core_type = #tpu.core_type<tc>, window_params = [{transform_indices = @transform_0, window_bounds = array<i64: 8, 128>}, {transform_indices = @transform_1, window_bounds = array<i64: 8, 128>}, {pipeline_mode = #tpu.pipeline_mode<synchronous>, transform_indices = @transform_2, window_bounds = array<i64: 128, 128>}, {pipeline_mode = #tpu.pipeline_mode<synchronous>, transform_indices = @transform_3, window_bounds = array<i64: 1, 128>}, {pipeline_mode = #tpu.pipeline_mode<synchronous>, transform_indices = @transform_4, window_bounds = array<i64: 128, 128>}, {pipeline_mode = #tpu.pipeline_mode<synchronous>, transform_indices = @transform_5, window_bounds = array<i64: 1, 128>}, {pipeline_mode = #tpu.pipeline_mode<synchronous>, transform_indices = @transform_6, window_bounds = array<i64: 128, 256>}, {pipeline_mode = #tpu.pipeline_mode<synchronous>, transform_indices = @transform_7, window_bounds = array<i64: 1, 256>}, {pipeline_mode = #tpu.pipeline_mode<synchronous>, transform_indices = @transform_8, window_bounds = array<i64: 128, 128>}, {pipeline_mode = #tpu.pipeline_mode<synchronous>, transform_indices = @transform_9, window_bounds = array<i64: 1, 128>}, {pipeline_mode = #tpu.pipeline_mode<synchronous>, transform_indices = @transform_10, window_bounds = array<i64: 128, 128>}, {pipeline_mode = #tpu.pipeline_mode<synchronous>, transform_indices = @transform_11, window_bounds = array<i64: 1, 128>}, {pipeline_mode = #tpu.pipeline_mode<synchronous>, transform_indices = @transform_12, window_bounds = array<i64: 128, 128>}, {pipeline_mode = #tpu.pipeline_mode<synchronous>, transform_indices = @transform_13, window_bounds = array<i64: 1, 128>}, {transform_indices = @transform_14, window_bounds = array<i64: 8, 128>}, {transform_indices = @transform_15, window_bounds = array<i64: 8, 384>}]} {
    %c0 = arith.constant 0 : index
    %c0_0 = arith.constant 0 : index
    %0 = vector.load %arg1[%c0, %c0_0] : memref<8x128xf32, #tpu.memory_space<vmem>>, vector<8x128xf32>
    %1 = arith.truncf %0 : vector<8x128xf32> to vector<8x128xbf16>
    %c0_1 = arith.constant 0 : index
    %c0_2 = arith.constant 0 : index
    %2 = vector.load %arg3[%c0_1, %c0_2] : memref<128x128xbf16, #tpu.memory_space<vmem>>, vector<128x128xbf16>
    %cst = arith.constant dense<0.000000e+00> : vector<8x128xf32>
    %3 = tpu.matmul %1, %2, %cst {dimension_numbers = #tpu.dot_dimension_numbers<[1], [0], [0], [1], [0, 0, 1, 1], [], []>} : vector<8x128xbf16>, vector<128x128xbf16>, vector<8x128xf32> -> vector<8x128xf32>
    %c0_3 = arith.constant 0 : index
    %c0_4 = arith.constant 0 : index
    %4 = vector.load %arg4[%c0_3, %c0_4] : memref<1x128xf32, #tpu.memory_space<vmem>>, vector<1x128xf32>
    %5 = vector.broadcast %4 : vector<1x128xf32> to vector<8x128xf32>
    %6 = arith.addf %3, %5 : vector<8x128xf32>
    %cst_5 = arith.constant 0.000000e+00 : f32
    %7 = vector.broadcast %cst_5 : f32 to vector<8x128xf32>
    %8 = arith.cmpf oge, %6, %7 : vector<8x128xf32>
    %cst_6 = arith.constant 2.000000e-01 : f32
    %9 = vector.broadcast %cst_6 : f32 to vector<8x128xf32>
    %10 = arith.mulf %9, %6 : vector<8x128xf32>
    %11 = arith.select %8, %6, %10 : vector<8x128xi1>, vector<8x128xf32>
    %12 = arith.truncf %11 : vector<8x128xf32> to vector<8x128xbf16>
    %c0_7 = arith.constant 0 : index
    %c0_8 = arith.constant 0 : index
    %13 = vector.load %arg5[%c0_7, %c0_8] : memref<128x128xbf16, #tpu.memory_space<vmem>>, vector<128x128xbf16>
    %cst_9 = arith.constant dense<0.000000e+00> : vector<8x128xf32>
    %14 = tpu.matmul %12, %13, %cst_9 {dimension_numbers = #tpu.dot_dimension_numbers<[1], [0], [0], [1], [0, 0, 1, 1], [], []>} : vector<8x128xbf16>, vector<128x128xbf16>, vector<8x128xf32> -> vector<8x128xf32>
    %c0_10 = arith.constant 0 : index
    %c0_11 = arith.constant 0 : index
    %15 = vector.load %arg6[%c0_10, %c0_11] : memref<1x128xf32, #tpu.memory_space<vmem>>, vector<1x128xf32>
    %16 = vector.broadcast %15 : vector<1x128xf32> to vector<8x128xf32>
    %17 = arith.addf %14, %16 : vector<8x128xf32>
    %cst_12 = arith.constant 0.000000e+00 : f32
    %18 = vector.broadcast %cst_12 : f32 to vector<8x128xf32>
    %19 = arith.cmpf oge, %17, %18 : vector<8x128xf32>
    %cst_13 = arith.constant 2.000000e-01 : f32
    %20 = vector.broadcast %cst_13 : f32 to vector<8x128xf32>
    %21 = arith.mulf %20, %17 : vector<8x128xf32>
    %22 = arith.select %19, %17, %21 : vector<8x128xi1>, vector<8x128xf32>
    %23 = arith.truncf %22 : vector<8x128xf32> to vector<8x128xbf16>
    %c0_14 = arith.constant 0 : index
    %c0_15 = arith.constant 0 : index
    %24 = vector.load %arg7[%c0_14, %c0_15] : memref<128x256xbf16, #tpu.memory_space<vmem>>, vector<128x256xbf16>
    %cst_16 = arith.constant dense<0.000000e+00> : vector<8x256xf32>
    %25 = tpu.matmul %23, %24, %cst_16 {dimension_numbers = #tpu.dot_dimension_numbers<[1], [0], [0], [1], [0, 0, 1, 1], [], []>} : vector<8x128xbf16>, vector<128x256xbf16>, vector<8x256xf32> -> vector<8x256xf32>
    %c0_17 = arith.constant 0 : index
    %c0_18 = arith.constant 0 : index
    %26 = vector.load %arg8[%c0_17, %c0_18] : memref<1x256xf32, #tpu.memory_space<vmem>>, vector<1x256xf32>
    %27 = vector.broadcast %26 : vector<1x256xf32> to vector<8x256xf32>
    %28 = arith.addf %25, %27 : vector<8x256xf32>
    %29 = vector.extract_strided_slice %28 {offsets = [0, 0], sizes = [8, 128], strides = [1, 1]} : vector<8x256xf32> to vector<8x128xf32>
    %30 = vector.extract_strided_slice %28 {offsets = [0, 128], sizes = [8, 128], strides = [1, 1]} : vector<8x256xf32> to vector<8x128xf32>
    %c0_19 = arith.constant 0 : index
    %c0_20 = arith.constant 0 : index
    %31 = vector.load %arg2[%c0_19, %c0_20] : memref<8x128xf32, #tpu.memory_space<vmem>>, vector<8x128xf32>
    %cst_21 = arith.constant 5.000000e-01 : f32
    %32 = vector.broadcast %cst_21 : f32 to vector<8x128xf32>
    %33 = arith.mulf %32, %30 : vector<8x128xf32>
    %34 = math.exp %33 : vector<8x128xf32>
    %35 = arith.mulf %31, %34 : vector<8x128xf32>
    %36 = arith.addf %29, %35 : vector<8x128xf32>
    %37 = arith.truncf %36 : vector<8x128xf32> to vector<8x128xbf16>
    %c0_22 = arith.constant 0 : index
    %c0_23 = arith.constant 0 : index
    %38 = vector.load %arg9[%c0_22, %c0_23] : memref<128x128xbf16, #tpu.memory_space<vmem>>, vector<128x128xbf16>
    %cst_24 = arith.constant dense<0.000000e+00> : vector<8x128xf32>
    %39 = tpu.matmul %37, %38, %cst_24 {dimension_numbers = #tpu.dot_dimension_numbers<[1], [0], [0], [1], [0, 0, 1, 1], [], []>} : vector<8x128xbf16>, vector<128x128xbf16>, vector<8x128xf32> -> vector<8x128xf32>
    %c0_25 = arith.constant 0 : index
    %c0_26 = arith.constant 0 : index
    %40 = vector.load %arg10[%c0_25, %c0_26] : memref<1x128xf32, #tpu.memory_space<vmem>>, vector<1x128xf32>
    %41 = vector.broadcast %40 : vector<1x128xf32> to vector<8x128xf32>
    %42 = arith.addf %39, %41 : vector<8x128xf32>
    %cst_27 = arith.constant 0.000000e+00 : f32
    %43 = vector.broadcast %cst_27 : f32 to vector<8x128xf32>
    %44 = arith.cmpf oge, %42, %43 : vector<8x128xf32>
    %cst_28 = arith.constant 2.000000e-01 : f32
    %45 = vector.broadcast %cst_28 : f32 to vector<8x128xf32>
    %46 = arith.mulf %45, %42 : vector<8x128xf32>
    %47 = arith.select %44, %42, %46 : vector<8x128xi1>, vector<8x128xf32>
    %48 = arith.truncf %47 : vector<8x128xf32> to vector<8x128xbf16>
    %c0_29 = arith.constant 0 : index
    %c0_30 = arith.constant 0 : index
    %49 = vector.load %arg11[%c0_29, %c0_30] : memref<128x128xbf16, #tpu.memory_space<vmem>>, vector<128x128xbf16>
    %cst_31 = arith.constant dense<0.000000e+00> : vector<8x128xf32>
    %50 = tpu.matmul %48, %49, %cst_31 {dimension_numbers = #tpu.dot_dimension_numbers<[1], [0], [0], [1], [0, 0, 1, 1], [], []>} : vector<8x128xbf16>, vector<128x128xbf16>, vector<8x128xf32> -> vector<8x128xf32>
    %c0_32 = arith.constant 0 : index
    %c0_33 = arith.constant 0 : index
    %51 = vector.load %arg12[%c0_32, %c0_33] : memref<1x128xf32, #tpu.memory_space<vmem>>, vector<1x128xf32>
    %52 = vector.broadcast %51 : vector<1x128xf32> to vector<8x128xf32>
    %53 = arith.addf %50, %52 : vector<8x128xf32>
    %cst_34 = arith.constant 0.000000e+00 : f32
    %54 = vector.broadcast %cst_34 : f32 to vector<8x128xf32>
    %55 = arith.cmpf oge, %53, %54 : vector<8x128xf32>
    %cst_35 = arith.constant 2.000000e-01 : f32
    %56 = vector.broadcast %cst_35 : f32 to vector<8x128xf32>
    %57 = arith.mulf %56, %53 : vector<8x128xf32>
    %58 = arith.select %55, %53, %57 : vector<8x128xi1>, vector<8x128xf32>
    %59 = arith.truncf %58 : vector<8x128xf32> to vector<8x128xbf16>
    %c0_36 = arith.constant 0 : index
    %c0_37 = arith.constant 0 : index
    %60 = vector.load %arg13[%c0_36, %c0_37] : memref<128x128xbf16, #tpu.memory_space<vmem>>, vector<128x128xbf16>
    %cst_38 = arith.constant dense<0.000000e+00> : vector<8x128xf32>
    %61 = tpu.matmul %59, %60, %cst_38 {dimension_numbers = #tpu.dot_dimension_numbers<[1], [0], [0], [1], [0, 0, 1, 1], [], []>} : vector<8x128xbf16>, vector<128x128xbf16>, vector<8x128xf32> -> vector<8x128xf32>
    %c0_39 = arith.constant 0 : index
    %c0_40 = arith.constant 0 : index
    %62 = vector.load %arg14[%c0_39, %c0_40] : memref<1x128xf32, #tpu.memory_space<vmem>>, vector<1x128xf32>
    %63 = vector.broadcast %62 : vector<1x128xf32> to vector<8x128xf32>
    %64 = arith.addf %61, %63 : vector<8x128xf32>
    %65 = math.tanh %64 : vector<8x128xf32>
    %c0_41 = arith.constant 0 : index
    %c0_42 = arith.constant 0 : index
    %66 = vector.load %arg15[%c0_41, %c0_42] : memref<8x128xf32, #tpu.memory_space<vmem>>, vector<8x128xf32>
    tpu.vector_store %arg15[%c0_41, %c0_42], %65 {strides = array<i32>} : memref<8x128xf32, #tpu.memory_space<vmem>>, vector<8x128xf32>,
    %c0_43 = arith.constant 0 : index
    %c0_44 = arith.constant 0 : index
    %67 = vector.load %arg16[%c0_43, %c0_44] : memref<8x384xf32, #tpu.memory_space<vmem>>, vector<8x256xf32>
    tpu.vector_store %arg16[%c0_43, %c0_44], %28 {strides = array<i32>} : memref<8x384xf32, #tpu.memory_space<vmem>>, vector<8x256xf32>,
    %c0_45 = arith.constant 0 : index
    %c256 = arith.constant 256 : index
    %68 = vector.load %arg16[%c0_45, %c256] : memref<8x384xf32, #tpu.memory_space<vmem>>, vector<8x128xf32>
    tpu.vector_store %arg16[%c0_45, %c256], %36 {strides = array<i32>} : memref<8x384xf32, #tpu.memory_space<vmem>>, vector<8x128xf32>,
    return
  }
  func.func @transform_0(%arg0: i32) -> (i32, i32) {
    %c0_i32 = arith.constant 0 : i32
    %c0_i32_0 = arith.constant 0 : i32
    return %arg0, %c0_i32 : i32, i32
  }
  func.func @transform_1(%arg0: i32) -> (i32, i32) {
    %c0_i32 = arith.constant 0 : i32
    %c0_i32_0 = arith.constant 0 : i32
    return %arg0, %c0_i32 : i32, i32
  }
  func.func @transform_2(%arg0: i32) -> (i32, i32) {
    %c0_i32 = arith.constant 0 : i32
    %c0_i32_0 = arith.constant 0 : i32
    %c0_i32_1 = arith.constant 0 : i32
    return %c0_i32, %c0_i32_0 : i32, i32
  }
  func.func @transform_3(%arg0: i32) -> (i32, i32) {
    %c0_i32 = arith.constant 0 : i32
    %c0_i32_0 = arith.constant 0 : i32
    %c0_i32_1 = arith.constant 0 : i32
    return %c0_i32, %c0_i32_0 : i32, i32
  }
  func.func @transform_4(%arg0: i32) -> (i32, i32) {
    %c0_i32 = arith.constant 0 : i32
    %c0_i32_0 = arith.constant 0 : i32
    %c0_i32_1 = arith.constant 0 : i32
    return %c0_i32, %c0_i32_0 : i32, i32
  }
  func.func @transform_5(%arg0: i32) -> (i32, i32) {
    %c0_i32 = arith.constant 0 : i32
    %c0_i32_0 = arith.constant 0 : i32
    %c0_i32_1 = arith.constant 0 : i32
    return %c0_i32, %c0_i32_0 : i32, i32
  }
  func.func @transform_6(%arg0: i32) -> (i32, i32) {
    %c0_i32 = arith.constant 0 : i32
    %c0_i32_0 = arith.constant 0 : i32
    %c0_i32_1 = arith.constant 0 : i32
    return %c0_i32, %c0_i32_0 : i32, i32
  }
  func.func @transform_7(%arg0: i32) -> (i32, i32) {
    %c0_i32 = arith.constant 0 : i32
    %c0_i32_0 = arith.constant 0 : i32
    %c0_i32_1 = arith.constant 0 : i32
    return %c0_i32, %c0_i32_0 : i32, i32
  }
  func.func @transform_8(%arg0: i32) -> (i32, i32) {
    %c0_i32 = arith.constant 0 : i32
    %c0_i32_0 = arith.constant 0 : i32
    %c0_i32_1 = arith.constant 0 : i32
    return %c0_i32, %c0_i32_0 : i32, i32
  }
  func.func @transform_9(%arg0: i32) -> (i32, i32) {
    %c0_i32 = arith.constant 0 : i32
    %c0_i32_0 = arith.constant 0 : i32
    %c0_i32_1 = arith.constant 0 : i32
    return %c0_i32, %c0_i32_0 : i32, i32
  }
  func.func @transform_10(%arg0: i32) -> (i32, i32) {
    %c0_i32 = arith.constant 0 : i32
    %c0_i32_0 = arith.constant 0 : i32
    %c0_i32_1 = arith.constant 0 : i32
    return %c0_i32, %c0_i32_0 : i32, i32
  }
  func.func @transform_11(%arg0: i32) -> (i32, i32) {
    %c0_i32 = arith.constant 0 : i32
    %c0_i32_0 = arith.constant 0 : i32
    %c0_i32_1 = arith.constant 0 : i32
    return %c0_i32, %c0_i32_0 : i32, i32
  }
  func.func @transform_12(%arg0: i32) -> (i32, i32) {
    %c0_i32 = arith.constant 0 : i32
    %c0_i32_0 = arith.constant 0 : i32
    %c0_i32_1 = arith.constant 0 : i32
    return %c0_i32, %c0_i32_0 : i32, i32
  }
  func.func @transform_13(%arg0: i32) -> (i32, i32) {
    %c0_i32 = arith.constant 0 : i32
    %c0_i32_0 = arith.constant 0 : i32
    %c0_i32_1 = arith.constant 0 : i32
    return %c0_i32, %c0_i32_0 : i32, i32
  }
  func.func @transform_14(%arg0: i32) -> (i32, i32) {
    %c0_i32 = arith.constant 0 : i32
    %c0_i32_0 = arith.constant 0 : i32
    return %arg0, %c0_i32 : i32, i32
  }
  func.func @transform_15(%arg0: i32) -> (i32, i32) {
    %c0_i32 = arith.constant 0 : i32
    %c0_i32_0 = arith.constant 0 : i32
    return %arg0, %c0_i32 : i32, i32
  }
}

module attributes {stable_mosaic.version = 11 : i64} {
  func.func @vae_kernel(%arg0: i32, %arg1: memref<8x128xf32, #tpu.memory_space<vmem>>, %arg2: memref<8x128xf32, #tpu.memory_space<vmem>>, %arg3: memref<128x128xbf16, #tpu.memory_space<vmem>>, %arg4: memref<1x128xf32, #tpu.memory_space<vmem>>, %arg5: memref<128x128xbf16, #tpu.memory_space<vmem>>, %arg6: memref<1x128xf32, #tpu.memory_space<vmem>>, %arg7: memref<128x256xbf16, #tpu.memory_space<vmem>>, %arg8: memref<1x256xf32, #tpu.memory_space<vmem>>, %arg9: memref<128x128xbf16, #tpu.memory_space<vmem>>, %arg10: memref<1x128xf32, #tpu.memory_space<vmem>>, %arg11: memref<128x128xbf16, #tpu.memory_space<vmem>>, %arg12: memref<1x128xf32, #tpu.memory_space<vmem>>, %arg13: memref<128x128xbf16, #tpu.memory_space<vmem>>, %arg14: memref<1x128xf32, #tpu.memory_space<vmem>>, %arg15: memref<8x128xf32, #tpu.memory_space<vmem>>, %arg16: memref<8x384xf32, #tpu.memory_space<vmem>>) attributes {dimension_semantics = [#tpu.dimension_semantics<parallel>], iteration_bounds = array<i64: 1>, scalar_prefetch = 0 : i64, scratch_operands = 0 : i64, tpu.core_type = #tpu.core_type<tc>, window_params = [{transform_indices = @transform_0, window_bounds = array<i64: 8, 128>}, {transform_indices = @transform_1, window_bounds = array<i64: 8, 128>}, {pipeline_mode = #tpu.pipeline_mode<synchronous>, transform_indices = @transform_2, window_bounds = array<i64: 128, 128>}, {pipeline_mode = #tpu.pipeline_mode<synchronous>, transform_indices = @transform_3, window_bounds = array<i64: 1, 128>}, {pipeline_mode = #tpu.pipeline_mode<synchronous>, transform_indices = @transform_4, window_bounds = array<i64: 128, 128>}, {pipeline_mode = #tpu.pipeline_mode<synchronous>, transform_indices = @transform_5, window_bounds = array<i64: 1, 128>}, {pipeline_mode = #tpu.pipeline_mode<synchronous>, transform_indices = @transform_6, window_bounds = array<i64: 128, 256>}, {pipeline_mode = #tpu.pipeline_mode<synchronous>, transform_indices = @transform_7, window_bounds = array<i64: 1, 256>}, {pipeline_mode = #tpu.pipeline_mode<synchronous>, transform_indices = @transform_8, window_bounds = array<i64: 128, 128>}, {pipeline_mode = #tpu.pipeline_mode<synchronous>, transform_indices = @transform_9, window_bounds = array<i64: 1, 128>}, {pipeline_mode = #tpu.pipeline_mode<synchronous>, transform_indices = @transform_10, window_bounds = array<i64: 128, 128>}, {pipeline_mode = #tpu.pipeline_mode<synchronous>, transform_indices = @transform_11, window_bounds = array<i64: 1, 128>}, {pipeline_mode = #tpu.pipeline_mode<synchronous>, transform_indices = @transform_12, window_bounds = array<i64: 128, 128>}, {pipeline_mode = #tpu.pipeline_mode<synchronous>, transform_indices = @transform_13, window_bounds = array<i64: 1, 128>}, {transform_indices = @transform_14, window_bounds = array<i64: 8, 128>}, {transform_indices = @transform_15, window_bounds = array<i64: 8, 384>}]} {
    %c0 = arith.constant 0 : index
    %c0_0 = arith.constant 0 : index
    %0 = vector.load %arg1[%c0, %c0_0] : memref<8x128xf32, #tpu.memory_space<vmem>>, vector<8x128xf32>
    %1 = arith.truncf %0 : vector<8x128xf32> to vector<8x128xbf16>
    %c0_1 = arith.constant 0 : index
    %c0_2 = arith.constant 0 : index
    %2 = vector.load %arg3[%c0_1, %c0_2] : memref<128x128xbf16, #tpu.memory_space<vmem>>, vector<128x128xbf16>
    %cst = arith.constant dense<0.000000e+00> : vector<8x128xf32>
    %3 = tpu.matmul %1, %2, %cst {dimension_numbers = #tpu.dot_dimension_numbers<[1], [0], [0], [1], [0, 0, 1, 1], [], []>} : vector<8x128xbf16>, vector<128x128xbf16>, vector<8x128xf32> -> vector<8x128xf32>
    %c0_3 = arith.constant 0 : index
    %c0_4 = arith.constant 0 : index
    %4 = vector.load %arg4[%c0_3, %c0_4] : memref<1x128xf32, #tpu.memory_space<vmem>>, vector<1x128xf32>
    %5 = vector.broadcast %4 : vector<1x128xf32> to vector<8x128xf32>
    %6 = arith.addf %3, %5 : vector<8x128xf32>
    %cst_5 = arith.constant 0.000000e+00 : f32
    %7 = vector.broadcast %cst_5 : f32 to vector<8x128xf32>
    %8 = arith.cmpf oge, %6, %7 : vector<8x128xf32>
    %cst_6 = arith.constant 2.000000e-01 : f32
    %9 = vector.broadcast %cst_6 : f32 to vector<8x128xf32>
    %10 = arith.mulf %9, %6 : vector<8x128xf32>
    %11 = arith.select %8, %6, %10 : vector<8x128xi1>, vector<8x128xf32>
    %12 = arith.truncf %11 : vector<8x128xf32> to vector<8x128xbf16>
    %c0_7 = arith.constant 0 : index
    %c0_8 = arith.constant 0 : index
    %13 = vector.load %arg5[%c0_7, %c0_8] : memref<128x128xbf16, #tpu.memory_space<vmem>>, vector<128x128xbf16>
    %cst_9 = arith.constant dense<0.000000e+00> : vector<8x128xf32>
    %14 = tpu.matmul %12, %13, %cst_9 {dimension_numbers = #tpu.dot_dimension_numbers<[1], [0], [0], [1], [0, 0, 1, 1], [], []>} : vector<8x128xbf16>, vector<128x128xbf16>, vector<8x128xf32> -> vector<8x128xf32>
    %c0_10 = arith.constant 0 : index
    %c0_11 = arith.constant 0 : index
    %15 = vector.load %arg6[%c0_10, %c0_11] : memref<1x128xf32, #tpu.memory_space<vmem>>, vector<1x128xf32>
    %16 = vector.broadcast %15 : vector<1x128xf32> to vector<8x128xf32>
    %17 = arith.addf %14, %16 : vector<8x128xf32>
    %cst_12 = arith.constant 0.000000e+00 : f32
    %18 = vector.broadcast %cst_12 : f32 to vector<8x128xf32>
    %19 = arith.cmpf oge, %17, %18 : vector<8x128xf32>
    %cst_13 = arith.constant 2.000000e-01 : f32
    %20 = vector.broadcast %cst_13 : f32 to vector<8x128xf32>
    %21 = arith.mulf %20, %17 : vector<8x128xf32>
    %22 = arith.select %19, %17, %21 : vector<8x128xi1>, vector<8x128xf32>
    %23 = arith.truncf %22 : vector<8x128xf32> to vector<8x128xbf16>
    %c0_14 = arith.constant 0 : index
    %c0_15 = arith.constant 0 : index
    %24 = vector.load %arg7[%c0_14, %c0_15] : memref<128x256xbf16, #tpu.memory_space<vmem>>, vector<128x256xbf16>
    %cst_16 = arith.constant dense<0.000000e+00> : vector<8x256xf32>
    %25 = tpu.matmul %23, %24, %cst_16 {dimension_numbers = #tpu.dot_dimension_numbers<[1], [0], [0], [1], [0, 0, 1, 1], [], []>} : vector<8x128xbf16>, vector<128x256xbf16>, vector<8x256xf32> -> vector<8x256xf32>
    %c0_17 = arith.constant 0 : index
    %c0_18 = arith.constant 0 : index
    %26 = vector.load %arg8[%c0_17, %c0_18] : memref<1x256xf32, #tpu.memory_space<vmem>>, vector<1x256xf32>
    %27 = vector.broadcast %26 : vector<1x256xf32> to vector<8x256xf32>
    %28 = arith.addf %25, %27 : vector<8x256xf32>
    %29 = vector.extract_strided_slice %28 {offsets = [0, 0], sizes = [8, 128], strides = [1, 1]} : vector<8x256xf32> to vector<8x128xf32>
    %30 = vector.extract_strided_slice %28 {offsets = [0, 128], sizes = [8, 128], strides = [1, 1]} : vector<8x256xf32> to vector<8x128xf32>
    %c0_19 = arith.constant 0 : index
    %c0_20 = arith.constant 0 : index
    %31 = vector.load %arg2[%c0_19, %c0_20] : memref<8x128xf32, #tpu.memory_space<vmem>>, vector<8x128xf32>
    %cst_21 = arith.constant 5.000000e-01 : f32
    %32 = vector.broadcast %cst_21 : f32 to vector<8x128xf32>
    %33 = arith.mulf %32, %30 : vector<8x128xf32>
    %34 = math.exp %33 : vector<8x128xf32>
    %35 = arith.mulf %31, %34 : vector<8x128xf32>
    %36 = arith.addf %29, %35 : vector<8x128xf32>
    %37 = arith.truncf %36 : vector<8x128xf32> to vector<8x128xbf16>
    %c0_22 = arith.constant 0 : index
    %c0_23 = arith.constant 0 : index
    %38 = vector.load %arg9[%c0_22, %c0_23] : memref<128x128xbf16, #tpu.memory_space<vmem>>, vector<128x128xbf16>
    %cst_24 = arith.constant dense<0.000000e+00> : vector<8x128xf32>
    %39 = tpu.matmul %37, %38, %cst_24 {dimension_numbers = #tpu.dot_dimension_numbers<[1], [0], [0], [1], [0, 0, 1, 1], [], []>} : vector<8x128xbf16>, vector<128x128xbf16>, vector<8x128xf32> -> vector<8x128xf32>
    %c0_25 = arith.constant 0 : index
    %c0_26 = arith.constant 0 : index
    %40 = vector.load %arg10[%c0_25, %c0_26] : memref<1x128xf32, #tpu.memory_space<vmem>>, vector<1x128xf32>
    %41 = vector.broadcast %40 : vector<1x128xf32> to vector<8x128xf32>
    %42 = arith.addf %39, %41 : vector<8x128xf32>
    %cst_27 = arith.constant 0.000000e+00 : f32
    %43 = vector.broadcast %cst_27 : f32 to vector<8x128xf32>
    %44 = arith.cmpf oge, %42, %43 : vector<8x128xf32>
    %cst_28 = arith.constant 2.000000e-01 : f32
    %45 = vector.broadcast %cst_28 : f32 to vector<8x128xf32>
    %46 = arith.mulf %45, %42 : vector<8x128xf32>
    %47 = arith.select %44, %42, %46 : vector<8x128xi1>, vector<8x128xf32>
    %48 = arith.truncf %47 : vector<8x128xf32> to vector<8x128xbf16>
    %c0_29 = arith.constant 0 : index
    %c0_30 = arith.constant 0 : index
    %49 = vector.load %arg11[%c0_29, %c0_30] : memref<128x128xbf16, #tpu.memory_space<vmem>>, vector<128x128xbf16>
    %cst_31 = arith.constant dense<0.000000e+00> : vector<8x128xf32>
    %50 = tpu.matmul %48, %49, %cst_31 {dimension_numbers = #tpu.dot_dimension_numbers<[1], [0], [0], [1], [0, 0, 1, 1], [], []>} : vector<8x128xbf16>, vector<128x128xbf16>, vector<8x128xf32> -> vector<8x128xf32>
    %c0_32 = arith.constant 0 : index
    %c0_33 = arith.constant 0 : index
    %51 = vector.load %arg12[%c0_32, %c0_33] : memref<1x128xf32, #tpu.memory_space<vmem>>, vector<1x128xf32>
    %52 = vector.broadcast %51 : vector<1x128xf32> to vector<8x128xf32>
    %53 = arith.addf %50, %52 : vector<8x128xf32>
    %cst_34 = arith.constant 0.000000e+00 : f32
    %54 = vector.broadcast %cst_34 : f32 to vector<8x128xf32>
    %55 = arith.cmpf oge, %53, %54 : vector<8x128xf32>
    %cst_35 = arith.constant 2.000000e-01 : f32
    %56 = vector.broadcast %cst_35 : f32 to vector<8x128xf32>
    %57 = arith.mulf %56, %53 : vector<8x128xf32>
    %58 = arith.select %55, %53, %57 : vector<8x128xi1>, vector<8x128xf32>
    %59 = arith.truncf %58 : vector<8x128xf32> to vector<8x128xbf16>
    %c0_36 = arith.constant 0 : index
    %c0_37 = arith.constant 0 : index
    %60 = vector.load %arg13[%c0_36, %c0_37] : memref<128x128xbf16, #tpu.memory_space<vmem>>, vector<128x128xbf16>
    %cst_38 = arith.constant dense<0.000000e+00> : vector<8x128xf32>
    %61 = tpu.matmul %59, %60, %cst_38 {dimension_numbers = #tpu.dot_dimension_numbers<[1], [0], [0], [1], [0, 0, 1, 1], [], []>} : vector<8x128xbf16>, vector<128x128xbf16>, vector<8x128xf32> -> vector<8x128xf32>
    %c0_39 = arith.constant 0 : index
    %c0_40 = arith.constant 0 : index
    %62 = vector.load %arg14[%c0_39, %c0_40] : memref<1x128xf32, #tpu.memory_space<vmem>>, vector<1x128xf32>
    %63 = vector.broadcast %62 : vector<1x128xf32> to vector<8x128xf32>
    %64 = arith.addf %61, %63 : vector<8x128xf32>
    %65 = math.tanh %64 : vector<8x128xf32>
    %c0_41 = arith.constant 0 : index
    %c0_42 = arith.constant 0 : index
    %66 = vector.load %arg15[%c0_41, %c0_42] : memref<8x128xf32, #tpu.memory_space<vmem>>, vector<8x128xf32>
    tpu.vector_store %arg15[%c0_41, %c0_42], %65 {strides = array<i32>} : memref<8x128xf32, #tpu.memory_space<vmem>>, vector<8x128xf32>,
    %c0_43 = arith.constant 0 : index
    %c0_44 = arith.constant 0 : index
    %67 = vector.load %arg16[%c0_43, %c0_44] : memref<8x384xf32, #tpu.memory_space<vmem>>, vector<8x256xf32>
    tpu.vector_store %arg16[%c0_43, %c0_44], %28 {strides = array<i32>} : memref<8x384xf32, #tpu.memory_space<vmem>>, vector<8x256xf32>,
    %c0_45 = arith.constant 0 : index
    %c256 = arith.constant 256 : index
    %68 = vector.load %arg16[%c0_45, %c256] : memref<8x384xf32, #tpu.memory_space<vmem>>, vector<8x128xf32>
    tpu.vector_store %arg16[%c0_45, %c256], %36 {strides = array<i32>} : memref<8x384xf32, #tpu.memory_space<vmem>>, vector<8x128xf32>,
    return
  }
  func.func @transform_0(%arg0: i32) -> (i32, i32) {
    %c0_i32 = arith.constant 0 : i32
    %c0_i32_0 = arith.constant 0 : i32
    return %arg0, %c0_i32 : i32, i32
  }
  func.func @transform_1(%arg0: i32) -> (i32, i32) {
    %c0_i32 = arith.constant 0 : i32
    %c0_i32_0 = arith.constant 0 : i32
    return %arg0, %c0_i32 : i32, i32
  }
  func.func @transform_2(%arg0: i32) -> (i32, i32) {
    %c0_i32 = arith.constant 0 : i32
    %c0_i32_0 = arith.constant 0 : i32
    %c0_i32_1 = arith.constant 0 : i32
    return %c0_i32, %c0_i32_0 : i32, i32
  }
  func.func @transform_3(%arg0: i32) -> (i32, i32) {
    %c0_i32 = arith.constant 0 : i32
    %c0_i32_0 = arith.constant 0 : i32
    %c0_i32_1 = arith.constant 0 : i32
    return %c0_i32, %c0_i32_0 : i32, i32
  }
  func.func @transform_4(%arg0: i32) -> (i32, i32) {
    %c0_i32 = arith.constant 0 : i32
    %c0_i32_0 = arith.constant 0 : i32
    %c0_i32_1 = arith.constant 0 : i32
    return %c0_i32, %c0_i32_0 : i32, i32
  }
  func.func @transform_5(%arg0: i32) -> (i32, i32) {
    %c0_i32 = arith.constant 0 : i32
    %c0_i32_0 = arith.constant 0 : i32
    %c0_i32_1 = arith.constant 0 : i32
    return %c0_i32, %c0_i32_0 : i32, i32
  }
  func.func @transform_6(%arg0: i32) -> (i32, i32) {
    %c0_i32 = arith.constant 0 : i32
    %c0_i32_0 = arith.constant 0 : i32
    %c0_i32_1 = arith.constant 0 : i32
    return %c0_i32, %c0_i32_0 : i32, i32
  }
  func.func @transform_7(%arg0: i32) -> (i32, i32) {
    %c0_i32 = arith.constant 0 : i32
    %c0_i32_0 = arith.constant 0 : i32
    %c0_i32_1 = arith.constant 0 : i32
    return %c0_i32, %c0_i32_0 : i32, i32
  }
  func.func @transform_8(%arg0: i32) -> (i32, i32) {
    %c0_i32 = arith.constant 0 : i32
    %c0_i32_0 = arith.constant 0 : i32
    %c0_i32_1 = arith.constant 0 : i32
    return %c0_i32, %c0_i32_0 : i32, i32
  }
  func.func @transform_9(%arg0: i32) -> (i32, i32) {
    %c0_i32 = arith.constant 0 : i32
    %c0_i32_0 = arith.constant 0 : i32
    %c0_i32_1 = arith.constant 0 : i32
    return %c0_i32, %c0_i32_0 : i32, i32
  }
  func.func @transform_10(%arg0: i32) -> (i32, i32) {
    %c0_i32 = arith.constant 0 : i32
    %c0_i32_0 = arith.constant 0 : i32
    %c0_i32_1 = arith.constant 0 : i32
    return %c0_i32, %c0_i32_0 : i32, i32
  }
  func.func @transform_11(%arg0: i32) -> (i32, i32) {
    %c0_i32 = arith.constant 0 : i32
    %c0_i32_0 = arith.constant 0 : i32
    %c0_i32_1 = arith.constant 0 : i32
    return %c0_i32, %c0_i32_0 : i32, i32
  }
  func.func @transform_12(%arg0: i32) -> (i32, i32) {
    %c0_i32 = arith.constant 0 : i32
    %c0_i32_0 = arith.constant 0 : i32
    %c0_i32_1 = arith.constant 0 : i32
    return %c0_i32, %c0_i32_0 : i32, i32
  }
  func.func @transform_13(%arg0: i32) -> (i32, i32) {
    %c0_i32 = arith.constant 0 : i32
    %c0_i32_0 = arith.constant 0 : i32
    %c0_i32_1 = arith.constant 0 : i32
    return %c0_i32, %c0_i32_0 : i32, i32
  }
  func.func @transform_14(%arg0: i32) -> (i32, i32) {
    %c0_i32 = arith.constant 0 : i32
    %c0_i32_0 = arith.constant 0 : i32
    return %arg0, %c0_i32 : i32, i32
  }
  func.func @transform_15(%arg0: i32) -> (i32, i32) {
    %c0_i32 = arith.constant 0 : i32
    %c0_i32_0 = arith.constant 0 : i32
    return %arg0, %c0_i32 : i32, i32
  }
}

</mosaic_0001>

<llo_original>
// kernel: tpu_custom_call.1
$region0: #{tpu_custom_call.1}
  #allocation0 [shape = 'u32[]', space=smem, size = 0x4, offset = 0x4, fixed_abs, tag = 'smem constant byte address 0x4 - core index']
  #allocation1 [shape = 'u32[144,128]{1,0:T(1,128)}', space=vmem, size = 0x12000, scoped, tag = 'internal scratch']
  %s0 = inlined_call_operand.hbm [shape: f32[8,128], index: 0, kind: input, shape index: {}]
  %s1 = inlined_call_operand.hbm [shape: f32[8,128], index: 1, kind: input, shape index: {}]
  %s2 = inlined_call_operand.hbm [shape: bf16[128,128], index: 2, kind: input, shape index: {}]
  %s3 = inlined_call_operand.vmem [shape: f32[1,128], index: 3, kind: input, shape index: {}]
  %s4 = inlined_call_operand.hbm [shape: bf16[128,128], index: 4, kind: input, shape index: {}]
  %s5 = inlined_call_operand.vmem [shape: f32[1,128], index: 5, kind: input, shape index: {}]
  %s6 = inlined_call_operand.hbm [shape: bf16[128,256], index: 6, kind: input, shape index: {}]
  %s7 = inlined_call_operand.vmem [shape: f32[1,256], index: 7, kind: input, shape index: {}]
  %s8 = inlined_call_operand.hbm [shape: bf16[128,128], index: 8, kind: input, shape index: {}]
  %s9 = inlined_call_operand.vmem [shape: f32[1,128], index: 9, kind: input, shape index: {}]
  %s10 = inlined_call_operand.hbm [shape: bf16[128,128], index: 10, kind: input, shape index: {}]
  %s11 = inlined_call_operand.vmem [shape: f32[1,128], index: 11, kind: input, shape index: {}]
  %s12 = inlined_call_operand.hbm [shape: bf16[128,128], index: 12, kind: input, shape index: {}]
  %s13 = inlined_call_operand.vmem [shape: f32[1,128], index: 13, kind: input, shape index: {}]
  %s14 = inlined_call_operand.hbm [shape: f32[8,128], index: 14, kind: output, shape index: {0}]
  %s15 = inlined_call_operand.hbm [shape: f32[8,384], index: 15, kind: output, shape index: {1}]
  %16 = xla_tuple %s14, %s15
  %s17 = sld [smem:[#allocation0]]
  $region106: #{tpu_custom_call.1} parent=0
    _
  %s19 = ssub.s32 1, %s17
  %s20 = scalar_select 0, %s19, %s17
  $region1: #{tpu_custom_call.1} parent=0
    #allocation2 [shape = 'u8[4096]{0}', space=vmem, size = 0x1000, scoped, tag = 'input window, operand 0, single buffered']
    #allocation3 [shape = 's32[1]{0}', space=sflag, size = 0x4, scoped, tag = 'scoped memory for tpu_custom_call.1']
    #allocation4 [shape = 's32[1]{0}', space=sflag, size = 0x4, scoped, tag = 'scoped memory for tpu_custom_call.1']
    #allocation5 [shape = 'u8[4096]{0}', space=vmem, size = 0x1000, scoped, tag = 'input window, operand 1, single buffered']
    #allocation6 [shape = 's32[1]{0}', space=sflag, size = 0x4, scoped, tag = 'scoped memory for tpu_custom_call.1']
    #allocation7 [shape = 'u8[32768]{0}', space=vmem, size = 0x8000, scoped, tag = 'input window, operand 2, single buffered']
    #allocation8 [shape = 'u8[32768]{0}', space=vmem, size = 0x8000, scoped, tag = 'input window, operand 4, single buffered']
    #allocation9 [shape = 's32[1]{0}', space=sflag, size = 0x4, scoped, tag = 'scoped memory for tpu_custom_call.1']
    #allocation10 [shape = 'u8[65536]{0}', space=vmem, size = 0x10000, scoped, tag = 'input window, operand 6, single buffered']
    #allocation11 [shape = 'u8[32768]{0}', space=vmem, size = 0x8000, scoped, tag = 'input window, operand 8, single buffered']
    #allocation12 [shape = 's32[1]{0}', space=sflag, size = 0x4, scoped, tag = 'scoped memory for tpu_custom_call.1']
    #allocation13 [shape = 'u8[32768]{0}', space=vmem, size = 0x8000, scoped, tag = 'input window, operand 10, single buffered']
    #allocation14 [shape = 'u8[32768]{0}', space=vmem, size = 0x8000, scoped, tag = 'input window, operand 12, single buffered']
    #allocation15 [shape = 's32[1]{0}', space=sflag, size = 0x4, scoped, tag = 'scoped memory for tpu_custom_call.1']
    #allocation16 [shape = 'u8[4096]{0}', space=vmem, size = 0x1000, scoped, tag = 'output window, operand 0, single buffered']
    #allocation17 [shape = 'u8[12288]{0}', space=vmem, size = 0x3000, scoped, tag = 'output window, operand 1, single buffered']
    #allocation18 [shape = 's32[1]{0}', space=sflag, size = 0x4, scoped, tag = 'scoped memory for tpu_custom_call.1']
    %21 = vsyncpa [#allocation3], 0
    %22 = vsyncpa [#allocation6], 0
    %23 = vsyncpa [#allocation9], 0
    %24 = vsyncpa [#allocation12], 0
    %25 = vsyncpa [#allocation15], 0
    %26 = vsyncpa [#allocation4], 0
    %27 = vsyncpa [#allocation18], 0
    // Predicated region
    $region2: #{tpu_custom_call.1} parent=1 // pred_check
      _
    $region3: #{tpu_custom_call.1} parent=1 // pred_check_branch
      %29 = sbr.rel (0) target = $region5
    $region4: #{tpu_custom_call.1} parent=1 // pred_region
      %s31 = ssub.s32 128, 128
      %32 = vsyncadd [#allocation3], %s31
      %s34 = sshll.u32 [#allocation2], 4
      %s35 = int_to_ptr.vmem [resolvable:$true] %s34
      %37 = dma.hbm_to_vmem [thread:$0]  %s0, 128, %s35, [#allocation3]
    $region5: #{tpu_custom_call.1} parent=1 // pred_fallthru
      _
    // Predicated region
    $region6: #{tpu_custom_call.1} parent=1 // pred_check
      _
    $region7: #{tpu_custom_call.1} parent=1 // pred_check_branch
      %39 = sbr.rel (0) target = $region9
    $region8: #{tpu_custom_call.1} parent=1 // pred_region
      %s41 = ssub.s32 128, 128
      %42 = vsyncadd [#allocation6], %s41
      %s44 = sshll.u32 [#allocation5], 4
      %s45 = int_to_ptr.vmem [resolvable:$true] %s44
      %47 = dma.hbm_to_vmem [thread:$0]  %s1, 128, %s45, [#allocation6]
    $region9: #{tpu_custom_call.1} parent=1 // pred_fallthru
      _
    // Predicated region
    $region10: #{tpu_custom_call.1} parent=1 // pred_check
      _
    $region11: #{tpu_custom_call.1} parent=1 // pred_check_branch
      %49 = sbr.rel (0) target = $region13
    $region12: #{tpu_custom_call.1} parent=1 // pred_region
      %s51 = ssub.s32 1024, 1024
      %52 = vsyncadd [#allocation6], %s51
      %s53 = sshll.u32 [#allocation7], 4
      %s54 = int_to_ptr.vmem [resolvable:$true] %s53
      %59 = dma.hbm_to_vmem [thread:$0]  %s2, 1024, %s54, [#allocation6], 64, 64, 4
    $region13: #{tpu_custom_call.1} parent=1 // pred_fallthru
      _
    // Predicated region
    $region14: #{tpu_custom_call.1} parent=1 // pred_check
      _
    $region15: #{tpu_custom_call.1} parent=1 // pred_check_branch
      %61 = sbr.rel (0) target = $region17
    $region16: #{tpu_custom_call.1} parent=1 // pred_region
      _
    $region17: #{tpu_custom_call.1} parent=1 // pred_fallthru
      _
    // Predicated region
    $region18: #{tpu_custom_call.1} parent=1 // pred_check
      _
    $region19: #{tpu_custom_call.1} parent=1 // pred_check_branch
      %63 = sbr.rel (0) target = $region21
    $region20: #{tpu_custom_call.1} parent=1 // pred_region
      %s65 = ssub.s32 1024, 1024
      %66 = vsyncadd [#allocation9], %s65
      %s67 = sshll.u32 [#allocation8], 4
      %s68 = int_to_ptr.vmem [resolvable:$true] %s67
      %73 = dma.hbm_to_vmem [thread:$0]  %s4, 1024, %s68, [#allocation9], 64, 64, 4
    $region21: #{tpu_custom_call.1} parent=1 // pred_fallthru
      _
    // Predicated region
    $region22: #{tpu_custom_call.1} parent=1 // pred_check
      _
    $region23: #{tpu_custom_call.1} parent=1 // pred_check_branch
      %75 = sbr.rel (0) target = $region25
    $region24: #{tpu_custom_call.1} parent=1 // pred_region
      _
    $region25: #{tpu_custom_call.1} parent=1 // pred_fallthru
      _
    // Predicated region
    $region26: #{tpu_custom_call.1} parent=1 // pred_check
      _
    $region27: #{tpu_custom_call.1} parent=1 // pred_check_branch
      %77 = sbr.rel (0) target = $region29
    $region28: #{tpu_custom_call.1} parent=1 // pred_region
      %s79 = ssub.s32 2048, 2048
      %80 = vsyncadd [#allocation9], %s79
      %s81 = sshll.u32 [#allocation10], 4
      %s82 = int_to_ptr.vmem [resolvable:$true] %s81
      %87 = dma.hbm_to_vmem [thread:$0]  %s6, 2048, %s82, [#allocation9], 128, 128, 8
    $region29: #{tpu_custom_call.1} parent=1 // pred_fallthru
      _
    // Predicated region
    $region30: #{tpu_custom_call.1} parent=1 // pred_check
      _
    $region31: #{tpu_custom_call.1} parent=1 // pred_check_branch
      %89 = sbr.rel (0) target = $region33
    $region32: #{tpu_custom_call.1} parent=1 // pred_region
      _
    $region33: #{tpu_custom_call.1} parent=1 // pred_fallthru
      _
    // Predicated region
    $region34: #{tpu_custom_call.1} parent=1 // pred_check
      _
    $region35: #{tpu_custom_call.1} parent=1 // pred_check_branch
      %91 = sbr.rel (0) target = $region37
    $region36: #{tpu_custom_call.1} parent=1 // pred_region
      %s93 = ssub.s32 1024, 1024
      %94 = vsyncadd [#allocation12], %s93
      %s95 = sshll.u32 [#allocation11], 4
      %s96 = int_to_ptr.vmem [resolvable:$true] %s95
      %101 = dma.hbm_to_vmem [thread:$0]  %s8, 1024, %s96, [#allocation12], 64, 64, 4
    $region37: #{tpu_custom_call.1} parent=1 // pred_fallthru
      _
    // Predicated region
    $region38: #{tpu_custom_call.1} parent=1 // pred_check
      _
    $region39: #{tpu_custom_call.1} parent=1 // pred_check_branch
      %103 = sbr.rel (0) target = $region41
    $region40: #{tpu_custom_call.1} parent=1 // pred_region
      _
    $region41: #{tpu_custom_call.1} parent=1 // pred_fallthru
      _
    // Predicated region
    $region42: #{tpu_custom_call.1} parent=1 // pred_check
      _
    $region43: #{tpu_custom_call.1} parent=1 // pred_check_branch
      %105 = sbr.rel (0) target = $region45
    $region44: #{tpu_custom_call.1} parent=1 // pred_region
      %s107 = ssub.s32 1024, 1024
      %108 = vsyncadd [#allocation12], %s107
      %s109 = sshll.u32 [#allocation13], 4
      %s110 = int_to_ptr.vmem [resolvable:$true] %s109
      %115 = dma.hbm_to_vmem [thread:$0]  %s10, 1024, %s110, [#allocation12], 64, 64, 4
    $region45: #{tpu_custom_call.1} parent=1 // pred_fallthru
      _
    // Predicated region
    $region46: #{tpu_custom_call.1} parent=1 // pred_check
      _
    $region47: #{tpu_custom_call.1} parent=1 // pred_check_branch
      %117 = sbr.rel (0) target = $region49
    $region48: #{tpu_custom_call.1} parent=1 // pred_region
      _
    $region49: #{tpu_custom_call.1} parent=1 // pred_fallthru
      _
    // Predicated region
    $region50: #{tpu_custom_call.1} parent=1 // pred_check
      _
    $region51: #{tpu_custom_call.1} parent=1 // pred_check_branch
      %119 = sbr.rel (0) target = $region53
    $region52: #{tpu_custom_call.1} parent=1 // pred_region
      %s121 = ssub.s32 1024, 1024
      %122 = vsyncadd [#allocation15], %s121
      %s123 = sshll.u32 [#allocation14], 4
      %s124 = int_to_ptr.vmem [resolvable:$true] %s123
      %129 = dma.hbm_to_vmem [thread:$0]  %s12, 1024, %s124, [#allocation15], 64, 64, 4
    $region53: #{tpu_custom_call.1} parent=1 // pred_fallthru
      _
    // Predicated region
    $region54: #{tpu_custom_call.1} parent=1 // pred_check
      _
    $region55: #{tpu_custom_call.1} parent=1 // pred_check_branch
      %131 = sbr.rel (0) target = $region57
    $region56: #{tpu_custom_call.1} parent=1 // pred_region
      _
    $region57: #{tpu_custom_call.1} parent=1 // pred_fallthru
      _
    // Predicated region
    $region58: #{tpu_custom_call.1} parent=1 // pred_check
      _
    $region59: #{tpu_custom_call.1} parent=1 // pred_check_branch
      %133 = sbr.rel (0) target = $region61
    $region60: #{tpu_custom_call.1} parent=1 // pred_region
      %134 = dma.done [#allocation3], 128
    $region61: #{tpu_custom_call.1} parent=1 // pred_fallthru
      _
    // Predicated region
    $region62: #{tpu_custom_call.1} parent=1 // pred_check
      _
    $region63: #{tpu_custom_call.1} parent=1 // pred_check_branch
      %136 = sbr.rel (0) target = $region65
    $region64: #{tpu_custom_call.1} parent=1 // pred_region
      %137 = dma.done [#allocation6], 128
    $region65: #{tpu_custom_call.1} parent=1 // pred_fallthru
      _
    // Predicated region
    $region66: #{tpu_custom_call.1} parent=1 // pred_check
      _
    $region67: #{tpu_custom_call.1} parent=1 // pred_check_branch
      %139 = sbr.rel (0) target = $region69
    $region68: #{tpu_custom_call.1} parent=1 // pred_region
      %140 = dma.done [#allocation6], 1024
    $region69: #{tpu_custom_call.1} parent=1 // pred_fallthru
      _
    // Predicated region
    $region70: #{tpu_custom_call.1} parent=1 // pred_check
      _
    $region71: #{tpu_custom_call.1} parent=1 // pred_check_branch
      %142 = sbr.rel (0) target = $region73
    $region72: #{tpu_custom_call.1} parent=1 // pred_region
      %143 = dma.done [#allocation9], 1024
    $region73: #{tpu_custom_call.1} parent=1 // pred_fallthru
      _
    // Predicated region
    $region74: #{tpu_custom_call.1} parent=1 // pred_check
      _
    $region75: #{tpu_custom_call.1} parent=1 // pred_check_branch
      %145 = sbr.rel (0) target = $region77
    $region76: #{tpu_custom_call.1} parent=1 // pred_region
      %146 = dma.done [#allocation9], 2048
    $region77: #{tpu_custom_call.1} parent=1 // pred_fallthru
      _
    // Predicated region
    $region78: #{tpu_custom_call.1} parent=1 // pred_check
      _
    $region79: #{tpu_custom_call.1} parent=1 // pred_check_branch
      %148 = sbr.rel (0) target = $region81
    $region80: #{tpu_custom_call.1} parent=1 // pred_region
      %149 = dma.done [#allocation12], 1024
    $region81: #{tpu_custom_call.1} parent=1 // pred_fallthru
      _
    // Predicated region
    $region82: #{tpu_custom_call.1} parent=1 // pred_check
      _
    $region83: #{tpu_custom_call.1} parent=1 // pred_check_branch
      %151 = sbr.rel (0) target = $region85
    $region84: #{tpu_custom_call.1} parent=1 // pred_region
      %152 = dma.done [#allocation12], 1024
    $region85: #{tpu_custom_call.1} parent=1 // pred_fallthru
      _
    // Predicated region
    $region86: #{tpu_custom_call.1} parent=1 // pred_check
      _
    $region87: #{tpu_custom_call.1} parent=1 // pred_check_branch
      %154 = sbr.rel (0) target = $region89
    $region88: #{tpu_custom_call.1} parent=1 // pred_region
      %155 = dma.done [#allocation15], 1024
    $region89: #{tpu_custom_call.1} parent=1 // pred_fallthru
      _
    %v157 = vld [vmem:[#allocation2] sm:$0xff]
    %v158 = vpack.c.bf16 %v157, %v157
    %v159 = vld [vmem:[#allocation7] sm:$0xf]
    %v160 = vld [vmem:[#allocation7 + $0x4] sm:$0xf]
    %v161 = vld [vmem:[#allocation7 + $0x8] sm:$0xf]
    %v162 = vld [vmem:[#allocation7 + $0xc] sm:$0xf]
    %v163 = vld [vmem:[#allocation7 + $0x10] sm:$0xf]
    %v164 = vld [vmem:[#allocation7 + $0x14] sm:$0xf]
    %v165 = vld [vmem:[#allocation7 + $0x18] sm:$0xf]
    %v166 = vld [vmem:[#allocation7 + $0x1c] sm:$0xf]
    %v167 = vld [vmem:[#allocation7 + $0x20] sm:$0xf]
    %v168 = vld [vmem:[#allocation7 + $0x24] sm:$0xf]
    %v169 = vld [vmem:[#allocation7 + $0x28] sm:$0xf]
    %v170 = vld [vmem:[#allocation7 + $0x2c] sm:$0xf]
    %v171 = vld [vmem:[#allocation7 + $0x30] sm:$0xf]
    %v172 = vld [vmem:[#allocation7 + $0x34] sm:$0xf]
    %v173 = vld [vmem:[#allocation7 + $0x38] sm:$0xf]
    %v174 = vld [vmem:[#allocation7 + $0x3c] sm:$0xf]
    %v175 = vld [vmem:[%s3] sm:$0x1]
    %v177 = vlaneseq
    %v178 = vshrl.u32 %v177, 7
    %v179 = vsub.s32 0, %v178
    %v180 = vrot.slane %v175, %v179
    %v198 = vunpack.c.l.b16 %v159
    %v199 = vunpack.c.l.b16 %v160
    %v200 = vunpack.c.l.b16 %v161
    %v201 = vunpack.c.l.b16 %v162
    %v202 = vunpack.c.l.b16 %v163
    %v203 = vunpack.c.l.b16 %v164
    %v204 = vunpack.c.l.b16 %v165
    %v205 = vunpack.c.l.b16 %v166
    %v206 = vunpack.c.l.b16 %v167
    %v207 = vunpack.c.l.b16 %v168
    %v208 = vunpack.c.l.b16 %v169
    %v209 = vunpack.c.l.b16 %v170
    %v210 = vunpack.c.l.b16 %v171
    %v211 = vunpack.c.l.b16 %v172
    %v212 = vunpack.c.l.b16 %v173
    %v213 = vunpack.c.l.b16 %v174
    %v214 = vpack.c.b16 %v199, %v198
    %v215 = vpack.c.b16 %v201, %v200
    %v216 = vpack.c.b16 %v203, %v202
    %v217 = vpack.c.b16 %v205, %v204
    %v218 = vpack.c.b16 %v207, %v206
    %v219 = vpack.c.b16 %v209, %v208
    %v220 = vpack.c.b16 %v211, %v210
    %v221 = vpack.c.b16 %v213, %v212
    %230 = vmatprep.subr.bf16.mxu0 0
    %231 = vmatpush1.bf16.msra.mxu0 %v221
    %232 = vmatprep.subr.bf16.mxu0 0
    %233 = vmatpush1.bf16.msra.mxu0 %v220
    %234 = vmatprep.subr.bf16.mxu0 0
    %235 = vmatpush1.bf16.msra.mxu0 %v219
    %236 = vmatprep.subr.bf16.mxu0 0
    %237 = vmatpush1.bf16.msra.mxu0 %v218
    %238 = vmatprep.subr.bf16.mxu0 0
    %239 = vmatpush1.bf16.msra.mxu0 %v217
    %240 = vmatprep.subr.bf16.mxu0 0
    %241 = vmatpush1.bf16.msra.mxu0 %v216
    %242 = vmatprep.subr.bf16.mxu0 0
    %243 = vmatpush1.bf16.msra.mxu0 %v215
    %244 = vmatprep.subr.bf16.mxu0 0
    %245 = vmatpush1.bf16.msra.mxu0 %v214
    %246 = vmatprep.subr.bf16.mxu0 0
    %247 = vmatpush2.bf16.msra.mxu0 0
    %248 = vmatprep.subr.bf16.mxu0 0
    %249 = vmatpush2.bf16.msra.mxu0 0
    %250 = vmatprep.subr.bf16.mxu0 0
    %251 = vmatpush2.bf16.msra.mxu0 0
    %252 = vmatprep.subr.bf16.mxu0 0
    %253 = vmatpush2.bf16.msra.mxu0 0
    %254 = vmatprep.subr.bf16.mxu0 0
    %255 = vmatpush2.bf16.msra.mxu0 0
    %256 = vmatprep.subr.bf16.mxu0 0
    %257 = vmatpush2.bf16.msra.mxu0 0
    %258 = vmatprep.subr.bf16.mxu0 0
    %259 = vmatpush2.bf16.msra.mxu0 0
    %260 = vmatprep.subr.bf16.mxu0 0
    %261 = vmatpush2.bf16.msra.mxu0 0
    %262 = vmatprep.mubr.bf16.mxu0 0
    %263 = vmatmul.mubr.bf16.gmra.mxu0 %v158
    %v264 = vpop.f32.mrf.mxu0
    %v265 = vadd.f32 %v180, %v264
    %v266 = vpop.f32.mrf.mxu0
    %v267 = vpop.f32.mrf.mxu0
    %v268 = vpop.f32.mrf.mxu0
    %269 = vdwg.mxu0
    %vm270 = vcmp.ge.f32.partialorder %v265, 0.0
    %v271 = vmul.f32 %v265, 0.2
    %v272 = vsel %vm270, %v265, %v271
    %v273 = vpack.c.bf16 %v272, %v272
    %v274 = vld [vmem:[#allocation8] sm:$0xf]
    %v275 = vld [vmem:[#allocation8 + $0x4] sm:$0xf]
    %v276 = vld [vmem:[#allocation8 + $0x8] sm:$0xf]
    %v277 = vld [vmem:[#allocation8 + $0xc] sm:$0xf]
    %v278 = vld [vmem:[#allocation8 + $0x10] sm:$0xf]
    %v279 = vld [vmem:[#allocation8 + $0x14] sm:$0xf]
    %v280 = vld [vmem:[#allocation8 + $0x18] sm:$0xf]
    %v281 = vld [vmem:[#allocation8 + $0x1c] sm:$0xf]
    %v282 = vld [vmem:[#allocation8 + $0x20] sm:$0xf]
    %v283 = vld [vmem:[#allocation8 + $0x24] sm:$0xf]
    %v284 = vld [vmem:[#allocation8 + $0x28] sm:$0xf]
    %v285 = vld [vmem:[#allocation8 + $0x2c] sm:$0xf]
    %v286 = vld [vmem:[#allocation8 + $0x30] sm:$0xf]
    %v287 = vld [vmem:[#allocation8 + $0x34] sm:$0xf]
    %v288 = vld [vmem:[#allocation8 + $0x38] sm:$0xf]
    %v289 = vld [vmem:[#allocation8 + $0x3c] sm:$0xf]
    %v290 = vld [vmem:[%s5] sm:$0x1]
    %v292 = vlaneseq
    %v293 = vshrl.u32 %v292, 7
    %v294 = vsub.s32 0, %v293
    %v295 = vrot.slane %v290, %v294
    %v313 = vunpack.c.l.b16 %v274
    %v314 = vunpack.c.l.b16 %v275
    %v315 = vunpack.c.l.b16 %v276
    %v316 = vunpack.c.l.b16 %v277
    %v317 = vunpack.c.l.b16 %v278
    %v318 = vunpack.c.l.b16 %v279
    %v319 = vunpack.c.l.b16 %v280
    %v320 = vunpack.c.l.b16 %v281
    %v321 = vunpack.c.l.b16 %v282
    %v322 = vunpack.c.l.b16 %v283
    %v323 = vunpack.c.l.b16 %v284
    %v324 = vunpack.c.l.b16 %v285
    %v325 = vunpack.c.l.b16 %v286
    %v326 = vunpack.c.l.b16 %v287
    %v327 = vunpack.c.l.b16 %v288
    %v328 = vunpack.c.l.b16 %v289
    %v329 = vpack.c.b16 %v314, %v313
    %v330 = vpack.c.b16 %v316, %v315
    %v331 = vpack.c.b16 %v318, %v317
    %v332 = vpack.c.b16 %v320, %v319
    %v333 = vpack.c.b16 %v322, %v321
    %v334 = vpack.c.b16 %v324, %v323
    %v335 = vpack.c.b16 %v326, %v325
    %v336 = vpack.c.b16 %v328, %v327
    %345 = vmatprep.subr.bf16.mxu0 0
    %346 = vmatpush1.bf16.msra.mxu0 %v336
    %347 = vmatprep.subr.bf16.mxu0 0
    %348 = vmatpush1.bf16.msra.mxu0 %v335
    %349 = vmatprep.subr.bf16.mxu0 0
    %350 = vmatpush1.bf16.msra.mxu0 %v334
    %351 = vmatprep.subr.bf16.mxu0 0
    %352 = vmatpush1.bf16.msra.mxu0 %v333
    %353 = vmatprep.subr.bf16.mxu0 0
    %354 = vmatpush1.bf16.msra.mxu0 %v332
    %355 = vmatprep.subr.bf16.mxu0 0
    %356 = vmatpush1.bf16.msra.mxu0 %v331
    %357 = vmatprep.subr.bf16.mxu0 0
    %358 = vmatpush1.bf16.msra.mxu0 %v330
    %359 = vmatprep.subr.bf16.mxu0 0
    %360 = vmatpush1.bf16.msra.mxu0 %v329
    %361 = vmatprep.subr.bf16.mxu0 0
    %362 = vmatpush2.bf16.msra.mxu0 0
    %363 = vmatprep.subr.bf16.mxu0 0
    %364 = vmatpush2.bf16.msra.mxu0 0
    %365 = vmatprep.subr.bf16.mxu0 0
    %366 = vmatpush2.bf16.msra.mxu0 0
    %367 = vmatprep.subr.bf16.mxu0 0
    %368 = vmatpush2.bf16.msra.mxu0 0
    %369 = vmatprep.subr.bf16.mxu0 0
    %370 = vmatpush2.bf16.msra.mxu0 0
    %371 = vmatprep.subr.bf16.mxu0 0
    %372 = vmatpush2.bf16.msra.mxu0 0
    %373 = vmatprep.subr.bf16.mxu0 0
    %374 = vmatpush2.bf16.msra.mxu0 0
    %375 = vmatprep.subr.bf16.mxu0 0
    %376 = vmatpush2.bf16.msra.mxu0 0
    %377 = vmatprep.mubr.bf16.mxu0 0
    %378 = vmatmul.mubr.bf16.gmra.mxu0 %v273
    %v379 = vpop.f32.mrf.mxu0
    %v380 = vadd.f32 %v295, %v379
    %v381 = vpop.f32.mrf.mxu0
    %v382 = vpop.f32.mrf.mxu0
    %v383 = vpop.f32.mrf.mxu0
    %384 = vdwg.mxu0
    %vm385 = vcmp.ge.f32.partialorder %v380, 0.0
    %v386 = vmul.f32 %v380, 0.2
    %v387 = vsel %vm385, %v380, %v386
    %v388 = vpack.c.bf16 %v387, %v387
    %v389 = vld [vmem:[#allocation10] sm:$0xff]
    %v390 = vld [vmem:[#allocation10 + $0x8] sm:$0xff]
    %v391 = vld [vmem:[#allocation10 + $0x10] sm:$0xff]
    %v392 = vld [vmem:[#allocation10 + $0x18] sm:$0xff]
    %v393 = vld [vmem:[#allocation10 + $0x20] sm:$0xff]
    %v394 = vld [vmem:[#allocation10 + $0x28] sm:$0xff]
    %v395 = vld [vmem:[#allocation10 + $0x30] sm:$0xff]
    %v396 = vld [vmem:[#allocation10 + $0x38] sm:$0xff]
    %v397 = vld [vmem:[#allocation10 + $0x40] sm:$0xff]
    %v398 = vld [vmem:[#allocation10 + $0x48] sm:$0xff]
    %v399 = vld [vmem:[#allocation10 + $0x50] sm:$0xff]
    %v400 = vld [vmem:[#allocation10 + $0x58] sm:$0xff]
    %v401 = vld [vmem:[#allocation10 + $0x60] sm:$0xff]
    %v402 = vld [vmem:[#allocation10 + $0x68] sm:$0xff]
    %v403 = vld [vmem:[#allocation10 + $0x70] sm:$0xff]
    %v404 = vld [vmem:[#allocation10 + $0x78] sm:$0xff]
    %v405 = vld [vmem:[%s7] sm:$0x3]
    %v407 = vlaneseq
    %v408 = vshrl.u32 %v407, 7
    %v409 = vsub.s32 0, %v408
    %v410 = vrot.slane %v405, %v409
    %v411 = vlaneseq
    %v412 = vshrl.u32 %v411, 7
    %v413 = vsub.s32 1, %v412
    %v414 = vrot.slane %v405, %v413
    %v433 = vunpack.c.l.b16 %v389
    %v434 = vunpack.c.h.b16 %v389
    %v435 = vunpack.c.l.b16 %v390
    %v436 = vunpack.c.h.b16 %v390
    %v437 = vunpack.c.l.b16 %v391
    %v438 = vunpack.c.h.b16 %v391
    %v439 = vunpack.c.l.b16 %v392
    %v440 = vunpack.c.h.b16 %v392
    %v441 = vunpack.c.l.b16 %v393
    %v442 = vunpack.c.h.b16 %v393
    %v443 = vunpack.c.l.b16 %v394
    %v444 = vunpack.c.h.b16 %v394
    %v445 = vunpack.c.l.b16 %v395
    %v446 = vunpack.c.h.b16 %v395
    %v447 = vunpack.c.l.b16 %v396
    %v448 = vunpack.c.h.b16 %v396
    %v449 = vunpack.c.l.b16 %v397
    %v450 = vunpack.c.h.b16 %v397
    %v451 = vunpack.c.l.b16 %v398
    %v452 = vunpack.c.h.b16 %v398
    %v453 = vunpack.c.l.b16 %v399
    %v454 = vunpack.c.h.b16 %v399
    %v455 = vunpack.c.l.b16 %v400
    %v456 = vunpack.c.h.b16 %v400
    %v457 = vunpack.c.l.b16 %v401
    %v458 = vunpack.c.h.b16 %v401
    %v459 = vunpack.c.l.b16 %v402
    %v460 = vunpack.c.h.b16 %v402
    %v461 = vunpack.c.l.b16 %v403
    %v462 = vunpack.c.h.b16 %v403
    %v463 = vunpack.c.l.b16 %v404
    %v464 = vunpack.c.h.b16 %v404
    %v465 = vpack.c.b16 %v435, %v433
    %v466 = vpack.c.b16 %v436, %v434
    %v467 = vpack.c.b16 %v439, %v437
    %v468 = vpack.c.b16 %v440, %v438
    %v469 = vpack.c.b16 %v443, %v441
    %v470 = vpack.c.b16 %v444, %v442
    %v471 = vpack.c.b16 %v447, %v445
    %v472 = vpack.c.b16 %v448, %v446
    %v473 = vpack.c.b16 %v451, %v449
    %v474 = vpack.c.b16 %v452, %v450
    %v475 = vpack.c.b16 %v455, %v453
    %v476 = vpack.c.b16 %v456, %v454
    %v477 = vpack.c.b16 %v459, %v457
    %v478 = vpack.c.b16 %v460, %v458
    %v479 = vpack.c.b16 %v463, %v461
    %v480 = vpack.c.b16 %v464, %v462
    %497 = vmatprep.subr.bf16.mxu0 %v480
    %498 = vmatpush1.bf16.msra.mxu0 %v479
    %499 = vmatprep.subr.bf16.mxu0 %v478
    %500 = vmatpush1.bf16.msra.mxu0 %v477
    %501 = vmatprep.subr.bf16.mxu0 %v476
    %502 = vmatpush1.bf16.msra.mxu0 %v475
    %503 = vmatprep.subr.bf16.mxu0 %v474
    %504 = vmatpush1.bf16.msra.mxu0 %v473
    %505 = vmatprep.subr.bf16.mxu0 %v472
    %506 = vmatpush1.bf16.msra.mxu0 %v471
    %507 = vmatprep.subr.bf16.mxu0 %v470
    %508 = vmatpush1.bf16.msra.mxu0 %v469
    %509 = vmatprep.subr.bf16.mxu0 %v468
    %510 = vmatpush1.bf16.msra.mxu0 %v467
    %511 = vmatprep.subr.bf16.mxu0 %v466
    %512 = vmatpush1.bf16.msra.mxu0 %v465
    %513 = vmatprep.subr.bf16.mxu0 0
    %514 = vmatpush2.bf16.msra.mxu0 0
    %515 = vmatprep.subr.bf16.mxu0 0
    %516 = vmatpush2.bf16.msra.mxu0 0
    %517 = vmatprep.subr.bf16.mxu0 0
    %518 = vmatpush2.bf16.msra.mxu0 0
    %519 = vmatprep.subr.bf16.mxu0 0
    %520 = vmatpush2.bf16.msra.mxu0 0
    %521 = vmatprep.subr.bf16.mxu0 0
    %522 = vmatpush2.bf16.msra.mxu0 0
    %523 = vmatprep.subr.bf16.mxu0 0
    %524 = vmatpush2.bf16.msra.mxu0 0
    %525 = vmatprep.subr.bf16.mxu0 0
    %526 = vmatpush2.bf16.msra.mxu0 0
    %527 = vmatprep.subr.bf16.mxu0 0
    %528 = vmatpush2.bf16.msra.mxu0 0
    %529 = vmatprep.mubr.bf16.mxu0 0
    %530 = vmatmul.mubr.bf16.gmra.mxu0 %v388
    %v531 = vpop.f32.mrf.mxu0
    %v532 = vadd.f32 %v410, %v531
    %v533 = vpop.f32.mrf.mxu0
    %v534 = vadd.f32 %v414, %v533
    %v535 = vpop.f32.mrf.mxu0
    %v536 = vpop.f32.mrf.mxu0
    %537 = vdwg.mxu0
    %v538 = vld [vmem:[#allocation5] sm:$0xff]
    %v539 = vmul.f32 %v534, 0.5
    %v540 = vmul.f32 %v539, 1.442695
    %v541 = vpow.pop %v540
    %v542 = vmul.f32 %v538, %v541
    %v543 = vadd.f32 %v532, %v542
    %v544 = vpack.c.bf16 %v543, %v543
    %v545 = vld [vmem:[#allocation11] sm:$0xf]
    %v546 = vld [vmem:[#allocation11 + $0x4] sm:$0xf]
    %v547 = vld [vmem:[#allocation11 + $0x8] sm:$0xf]
    %v548 = vld [vmem:[#allocation11 + $0xc] sm:$0xf]
    %v549 = vld [vmem:[#allocation11 + $0x10] sm:$0xf]
    %v550 = vld [vmem:[#allocation11 + $0x14] sm:$0xf]
    %v551 = vld [vmem:[#allocation11 + $0x18] sm:$0xf]
    %v552 = vld [vmem:[#allocation11 + $0x1c] sm:$0xf]
    %v553 = vld [vmem:[#allocation11 + $0x20] sm:$0xf]
    %v554 = vld [vmem:[#allocation11 + $0x24] sm:$0xf]
    %v555 = vld [vmem:[#allocation11 + $0x28] sm:$0xf]
    %v556 = vld [vmem:[#allocation11 + $0x2c] sm:$0xf]
    %v557 = vld [vmem:[#allocation11 + $0x30] sm:$0xf]
    %v558 = vld [vmem:[#allocation11 + $0x34] sm:$0xf]
    %v559 = vld [vmem:[#allocation11 + $0x38] sm:$0xf]
    %v560 = vld [vmem:[#allocation11 + $0x3c] sm:$0xf]
    %v561 = vld [vmem:[%s9] sm:$0x1]
    %v563 = vlaneseq
    %v564 = vshrl.u32 %v563, 7
    %v565 = vsub.s32 0, %v564
    %v566 = vrot.slane %v561, %v565
    %v584 = vunpack.c.l.b16 %v545
    %v585 = vunpack.c.l.b16 %v546
    %v586 = vunpack.c.l.b16 %v547
    %v587 = vunpack.c.l.b16 %v548
    %v588 = vunpack.c.l.b16 %v549
    %v589 = vunpack.c.l.b16 %v550
    %v590 = vunpack.c.l.b16 %v551
    %v591 = vunpack.c.l.b16 %v552
    %v592 = vunpack.c.l.b16 %v553
    %v593 = vunpack.c.l.b16 %v554
    %v594 = vunpack.c.l.b16 %v555
    %v595 = vunpack.c.l.b16 %v556
    %v596 = vunpack.c.l.b16 %v557
    %v597 = vunpack.c.l.b16 %v558
    %v598 = vunpack.c.l.b16 %v559
    %v599 = vunpack.c.l.b16 %v560
    %v600 = vpack.c.b16 %v585, %v584
    %v601 = vpack.c.b16 %v587, %v586
    %v602 = vpack.c.b16 %v589, %v588
    %v603 = vpack.c.b16 %v591, %v590
    %v604 = vpack.c.b16 %v593, %v592
    %v605 = vpack.c.b16 %v595, %v594
    %v606 = vpack.c.b16 %v597, %v596
    %v607 = vpack.c.b16 %v599, %v598
    %616 = vmatprep.subr.bf16.mxu0 0
    %617 = vmatpush1.bf16.msra.mxu0 %v607
    %618 = vmatprep.subr.bf16.mxu0 0
    %619 = vmatpush1.bf16.msra.mxu0 %v606
    %620 = vmatprep.subr.bf16.mxu0 0
    %621 = vmatpush1.bf16.msra.mxu0 %v605
    %622 = vmatprep.subr.bf16.mxu0 0
    %623 = vmatpush1.bf16.msra.mxu0 %v604
    %624 = vmatprep.subr.bf16.mxu0 0
    %625 = vmatpush1.bf16.msra.mxu0 %v603
    %626 = vmatprep.subr.bf16.mxu0 0
    %627 = vmatpush1.bf16.msra.mxu0 %v602
    %628 = vmatprep.subr.bf16.mxu0 0
    %629 = vmatpush1.bf16.msra.mxu0 %v601
    %630 = vmatprep.subr.bf16.mxu0 0
    %631 = vmatpush1.bf16.msra.mxu0 %v600
    %632 = vmatprep.subr.bf16.mxu0 0
    %633 = vmatpush2.bf16.msra.mxu0 0
    %634 = vmatprep.subr.bf16.mxu0 0
    %635 = vmatpush2.bf16.msra.mxu0 0
    %636 = vmatprep.subr.bf16.mxu0 0
    %637 = vmatpush2.bf16.msra.mxu0 0
    %638 = vmatprep.subr.bf16.mxu0 0
    %639 = vmatpush2.bf16.msra.mxu0 0
    %640 = vmatprep.subr.bf16.mxu0 0
    %641 = vmatpush2.bf16.msra.mxu0 0
    %642 = vmatprep.subr.bf16.mxu0 0
    %643 = vmatpush2.bf16.msra.mxu0 0
    %644 = vmatprep.subr.bf16.mxu0 0
    %645 = vmatpush2.bf16.msra.mxu0 0
    %646 = vmatprep.subr.bf16.mxu0 0
    %647 = vmatpush2.bf16.msra.mxu0 0
    %648 = vmatprep.mubr.bf16.mxu0 0
    %649 = vmatmul.mubr.bf16.gmra.mxu0 %v544
    %v650 = vpop.f32.mrf.mxu0
    %v651 = vadd.f32 %v566, %v650
    %v652 = vpop.f32.mrf.mxu0
    %v653 = vpop.f32.mrf.mxu0
    %v654 = vpop.f32.mrf.mxu0
    %655 = vdwg.mxu0
    %vm656 = vcmp.ge.f32.partialorder %v651, 0.0
    %v657 = vmul.f32 %v651, 0.2
    %v658 = vsel %vm656, %v651, %v657
    %v659 = vpack.c.bf16 %v658, %v658
    %v660 = vld [vmem:[#allocation13] sm:$0xf]
    %v661 = vld [vmem:[#allocation13 + $0x4] sm:$0xf]
    %v662 = vld [vmem:[#allocation13 + $0x8] sm:$0xf]
    %v663 = vld [vmem:[#allocation13 + $0xc] sm:$0xf]
    %v664 = vld [vmem:[#allocation13 + $0x10] sm:$0xf]
    %v665 = vld [vmem:[#allocation13 + $0x14] sm:$0xf]
    %v666 = vld [vmem:[#allocation13 + $0x18] sm:$0xf]
    %v667 = vld [vmem:[#allocation13 + $0x1c] sm:$0xf]
    %v668 = vld [vmem:[#allocation13 + $0x20] sm:$0xf]
    %v669 = vld [vmem:[#allocation13 + $0x24] sm:$0xf]
    %v670 = vld [vmem:[#allocation13 + $0x28] sm:$0xf]
    %v671 = vld [vmem:[#allocation13 + $0x2c] sm:$0xf]
    %v672 = vld [vmem:[#allocation13 + $0x30] sm:$0xf]
    %v673 = vld [vmem:[#allocation13 + $0x34] sm:$0xf]
    %v674 = vld [vmem:[#allocation13 + $0x38] sm:$0xf]
    %v675 = vld [vmem:[#allocation13 + $0x3c] sm:$0xf]
    %v676 = vld [vmem:[%s11] sm:$0x1]
    %v678 = vlaneseq
    %v679 = vshrl.u32 %v678, 7
    %v680 = vsub.s32 0, %v679
    %v681 = vrot.slane %v676, %v680
    %v699 = vunpack.c.l.b16 %v660
    %v700 = vunpack.c.l.b16 %v661
    %v701 = vunpack.c.l.b16 %v662
    %v702 = vunpack.c.l.b16 %v663
    %v703 = vunpack.c.l.b16 %v664
    %v704 = vunpack.c.l.b16 %v665
    %v705 = vunpack.c.l.b16 %v666
    %v706 = vunpack.c.l.b16 %v667
    %v707 = vunpack.c.l.b16 %v668
    %v708 = vunpack.c.l.b16 %v669
    %v709 = vunpack.c.l.b16 %v670
    %v710 = vunpack.c.l.b16 %v671
    %v711 = vunpack.c.l.b16 %v672
    %v712 = vunpack.c.l.b16 %v673
    %v713 = vunpack.c.l.b16 %v674
    %v714 = vunpack.c.l.b16 %v675
    %v715 = vpack.c.b16 %v700, %v699
    %v716 = vpack.c.b16 %v702, %v701
    %v717 = vpack.c.b16 %v704, %v703
    %v718 = vpack.c.b16 %v706, %v705
    %v719 = vpack.c.b16 %v708, %v707
    %v720 = vpack.c.b16 %v710, %v709
    %v721 = vpack.c.b16 %v712, %v711
    %v722 = vpack.c.b16 %v714, %v713
    %731 = vmatprep.subr.bf16.mxu0 0
    %732 = vmatpush1.bf16.msra.mxu0 %v722
    %733 = vmatprep.subr.bf16.mxu0 0
    %734 = vmatpush1.bf16.msra.mxu0 %v721
    %735 = vmatprep.subr.bf16.mxu0 0
    %736 = vmatpush1.bf16.msra.mxu0 %v720
    %737 = vmatprep.subr.bf16.mxu0 0
    %738 = vmatpush1.bf16.msra.mxu0 %v719
    %739 = vmatprep.subr.bf16.mxu0 0
    %740 = vmatpush1.bf16.msra.mxu0 %v718
    %741 = vmatprep.subr.bf16.mxu0 0
    %742 = vmatpush1.bf16.msra.mxu0 %v717
    %743 = vmatprep.subr.bf16.mxu0 0
    %744 = vmatpush1.bf16.msra.mxu0 %v716
    %745 = vmatprep.subr.bf16.mxu0 0
    %746 = vmatpush1.bf16.msra.mxu0 %v715
    %747 = vmatprep.subr.bf16.mxu0 0
    %748 = vmatpush2.bf16.msra.mxu0 0
    %749 = vmatprep.subr.bf16.mxu0 0
    %750 = vmatpush2.bf16.msra.mxu0 0
    %751 = vmatprep.subr.bf16.mxu0 0
    %752 = vmatpush2.bf16.msra.mxu0 0
    %753 = vmatprep.subr.bf16.mxu0 0
    %754 = vmatpush2.bf16.msra.mxu0 0
    %755 = vmatprep.subr.bf16.mxu0 0
    %756 = vmatpush2.bf16.msra.mxu0 0
    %757 = vmatprep.subr.bf16.mxu0 0
    %758 = vmatpush2.bf16.msra.mxu0 0
    %759 = vmatprep.subr.bf16.mxu0 0
    %760 = vmatpush2.bf16.msra.mxu0 0
    %761 = vmatprep.subr.bf16.mxu0 0
    %762 = vmatpush2.bf16.msra.mxu0 0
    %763 = vmatprep.mubr.bf16.mxu0 0
    %764 = vmatmul.mubr.bf16.gmra.mxu0 %v659
    %v765 = vpop.f32.mrf.mxu0
    %v766 = vadd.f32 %v681, %v765
    %v767 = vpop.f32.mrf.mxu0
    %v768 = vpop.f32.mrf.mxu0
    %v769 = vpop.f32.mrf.mxu0
    %770 = vdwg.mxu0
    %vm771 = vcmp.ge.f32.partialorder %v766, 0.0
    %v772 = vmul.f32 %v766, 0.2
    %v773 = vsel %vm771, %v766, %v772
    %v774 = vpack.c.bf16 %v773, %v773
    %v775 = vld [vmem:[#allocation14] sm:$0xf]
    %v776 = vld [vmem:[#allocation14 + $0x4] sm:$0xf]
    %v777 = vld [vmem:[#allocation14 + $0x8] sm:$0xf]
    %v778 = vld [vmem:[#allocation14 + $0xc] sm:$0xf]
    %v779 = vld [vmem:[#allocation14 + $0x10] sm:$0xf]
    %v780 = vld [vmem:[#allocation14 + $0x14] sm:$0xf]
    %v781 = vld [vmem:[#allocation14 + $0x18] sm:$0xf]
    %v782 = vld [vmem:[#allocation14 + $0x1c] sm:$0xf]
    %v783 = vld [vmem:[#allocation14 + $0x20] sm:$0xf]
    %v784 = vld [vmem:[#allocation14 + $0x24] sm:$0xf]
    %v785 = vld [vmem:[#allocation14 + $0x28] sm:$0xf]
    %v786 = vld [vmem:[#allocation14 + $0x2c] sm:$0xf]
    %v787 = vld [vmem:[#allocation14 + $0x30] sm:$0xf]
    %v788 = vld [vmem:[#allocation14 + $0x34] sm:$0xf]
    %v789 = vld [vmem:[#allocation14 + $0x38] sm:$0xf]
    %v790 = vld [vmem:[#allocation14 + $0x3c] sm:$0xf]
    %v791 = vld [vmem:[%s13] sm:$0x1]
    %v793 = vlaneseq
    %v794 = vshrl.u32 %v793, 7
    %v795 = vsub.s32 0, %v794
    %v796 = vrot.slane %v791, %v795
    %v814 = vunpack.c.l.b16 %v775
    %v815 = vunpack.c.l.b16 %v776
    %v816 = vunpack.c.l.b16 %v777
    %v817 = vunpack.c.l.b16 %v778
    %v818 = vunpack.c.l.b16 %v779
    %v819 = vunpack.c.l.b16 %v780
    %v820 = vunpack.c.l.b16 %v781
    %v821 = vunpack.c.l.b16 %v782
    %v822 = vunpack.c.l.b16 %v783
    %v823 = vunpack.c.l.b16 %v784
    %v824 = vunpack.c.l.b16 %v785
    %v825 = vunpack.c.l.b16 %v786
    %v826 = vunpack.c.l.b16 %v787
    %v827 = vunpack.c.l.b16 %v788
    %v828 = vunpack.c.l.b16 %v789
    %v829 = vunpack.c.l.b16 %v790
    %v830 = vpack.c.b16 %v815, %v814
    %v831 = vpack.c.b16 %v817, %v816
    %v832 = vpack.c.b16 %v819, %v818
    %v833 = vpack.c.b16 %v821, %v820
    %v834 = vpack.c.b16 %v823, %v822
    %v835 = vpack.c.b16 %v825, %v824
    %v836 = vpack.c.b16 %v827, %v826
    %v837 = vpack.c.b16 %v829, %v828
    %846 = vmatprep.subr.bf16.mxu0 0
    %847 = vmatpush1.bf16.msra.mxu0 %v837
    %848 = vmatprep.subr.bf16.mxu0 0
    %849 = vmatpush1.bf16.msra.mxu0 %v836
    %850 = vmatprep.subr.bf16.mxu0 0
    %851 = vmatpush1.bf16.msra.mxu0 %v835
    %852 = vmatprep.subr.bf16.mxu0 0
    %853 = vmatpush1.bf16.msra.mxu0 %v834
    %854 = vmatprep.subr.bf16.mxu0 0
    %855 = vmatpush1.bf16.msra.mxu0 %v833
    %856 = vmatprep.subr.bf16.mxu0 0
    %857 = vmatpush1.bf16.msra.mxu0 %v832
    %858 = vmatprep.subr.bf16.mxu0 0
    %859 = vmatpush1.bf16.msra.mxu0 %v831
    %860 = vmatprep.subr.bf16.mxu0 0
    %861 = vmatpush1.bf16.msra.mxu0 %v830
    %862 = vmatprep.subr.bf16.mxu0 0
    %863 = vmatpush2.bf16.msra.mxu0 0
    %864 = vmatprep.subr.bf16.mxu0 0
    %865 = vmatpush2.bf16.msra.mxu0 0
    %866 = vmatprep.subr.bf16.mxu0 0
    %867 = vmatpush2.bf16.msra.mxu0 0
    %868 = vmatprep.subr.bf16.mxu0 0
    %869 = vmatpush2.bf16.msra.mxu0 0
    %870 = vmatprep.subr.bf16.mxu0 0
    %871 = vmatpush2.bf16.msra.mxu0 0
    %872 = vmatprep.subr.bf16.mxu0 0
    %873 = vmatpush2.bf16.msra.mxu0 0
    %874 = vmatprep.subr.bf16.mxu0 0
    %875 = vmatpush2.bf16.msra.mxu0 0
    %876 = vmatprep.subr.bf16.mxu0 0
    %877 = vmatpush2.bf16.msra.mxu0 0
    %878 = vmatprep.mubr.bf16.mxu0 0
    %879 = vmatmul.mubr.bf16.gmra.mxu0 %v774
    %v880 = vpop.f32.mrf.mxu0
    %v881 = vadd.f32 %v796, %v880
    %v882 = vpop.f32.mrf.mxu0
    %v883 = vpop.f32.mrf.mxu0
    %v884 = vpop.f32.mrf.mxu0
    %885 = vdwg.mxu0
    %v886 = vtanh.pop %v881
    %887 = vst [vmem:[#allocation16] sm:$0xff] %v886
    %888 = vst [vmem:[#allocation17] sm:$0xff] %v532
    %889 = vst [vmem:[#allocation17 + $0x8] sm:$0xff] %v534
    %890 = vst [vmem:[#allocation17 + $0x10] sm:$0xff] %v543
    // Predicated region
    $region90: #{tpu_custom_call.1} parent=1 // pred_check
      _
    $region91: #{tpu_custom_call.1} parent=1 // pred_check_branch
      %892 = sbr.rel (0) target = $region93
    $region92: #{tpu_custom_call.1} parent=1 // pred_region
      %s894 = ssub.s32 128, 128
      %895 = vsyncadd [#allocation4], %s894
      %s897 = sshll.u32 [#allocation16], 4
      %s898 = int_to_ptr.vmem [resolvable:$true] %s897
      %900 = dma.vmem_to_hbm [thread:$0]  %s898, 128, %s14, [#allocation4]
    $region93: #{tpu_custom_call.1} parent=1 // pred_fallthru
      _
    // Predicated region
    $region94: #{tpu_custom_call.1} parent=1 // pred_check
      _
    $region95: #{tpu_custom_call.1} parent=1 // pred_check_branch
      %902 = sbr.rel (0) target = $region97
    $region96: #{tpu_custom_call.1} parent=1 // pred_region
      %s904 = ssub.s32 384, 384
      %905 = vsyncadd [#allocation18], %s904
      %s907 = sshll.u32 [#allocation17], 4
      %s908 = int_to_ptr.vmem [resolvable:$true] %s907
      %910 = dma.vmem_to_hbm [thread:$0]  %s908, 384, %s15, [#allocation18]
    $region97: #{tpu_custom_call.1} parent=1 // pred_fallthru
      _
    // Predicated region
    $region98: #{tpu_custom_call.1} parent=1 // pred_check
      _
    $region99: #{tpu_custom_call.1} parent=1 // pred_check_branch
      %912 = sbr.rel (0) target = $region101
    $region100: #{tpu_custom_call.1} parent=1 // pred_region
      %913 = dma.done [#allocation4], 128
    $region101: #{tpu_custom_call.1} parent=1 // pred_fallthru
      _
    // Predicated region
    $region102: #{tpu_custom_call.1} parent=1 // pred_check
      _
    $region103: #{tpu_custom_call.1} parent=1 // pred_check_branch
      %915 = sbr.rel (0) target = $region105
    $region104: #{tpu_custom_call.1} parent=1 // pred_region
      %916 = dma.done [#allocation18], 384
    $region105: #{tpu_custom_call.1} parent=1 // pred_fallthru
      _
    %917 = vsyncpa [#allocation3], 1
    %918 = vsyncpa [#allocation6], 1
    %919 = vsyncpa [#allocation9], 1
    %920 = vsyncpa [#allocation12], 1
    %921 = vsyncpa [#allocation15], 1
    %922 = vsyncpa [#allocation4], 1
    %923 = vsyncpa [#allocation18], 1

// kernel: tpu_custom_call.1
$region0: #{tpu_custom_call.1}
  #allocation0 [shape = 'u32[]', space=smem, size = 0x4, offset = 0x4, fixed_abs, tag = 'smem constant byte address 0x4 - core index']
  #allocation1 [shape = 'u32[144,128]{1,0:T(1,128)}', space=vmem, size = 0x12000, scoped, tag = 'internal scratch']
  %s0 = inlined_call_operand.hbm [shape: f32[8,128], index: 0, kind: input, shape index: {}]
  %s1 = inlined_call_operand.hbm [shape: f32[8,128], index: 1, kind: input, shape index: {}]
  %s2 = inlined_call_operand.hbm [shape: bf16[128,128], index: 2, kind: input, shape index: {}]
  %s3 = inlined_call_operand.vmem [shape: f32[1,128], index: 3, kind: input, shape index: {}]
  %s4 = inlined_call_operand.hbm [shape: bf16[128,128], index: 4, kind: input, shape index: {}]
  %s5 = inlined_call_operand.vmem [shape: f32[1,128], index: 5, kind: input, shape index: {}]
  %s6 = inlined_call_operand.hbm [shape: bf16[128,256], index: 6, kind: input, shape index: {}]
  %s7 = inlined_call_operand.vmem [shape: f32[1,256], index: 7, kind: input, shape index: {}]
  %s8 = inlined_call_operand.hbm [shape: bf16[128,128], index: 8, kind: input, shape index: {}]
  %s9 = inlined_call_operand.vmem [shape: f32[1,128], index: 9, kind: input, shape index: {}]
  %s10 = inlined_call_operand.hbm [shape: bf16[128,128], index: 10, kind: input, shape index: {}]
  %s11 = inlined_call_operand.vmem [shape: f32[1,128], index: 11, kind: input, shape index: {}]
  %s12 = inlined_call_operand.hbm [shape: bf16[128,128], index: 12, kind: input, shape index: {}]
  %s13 = inlined_call_operand.vmem [shape: f32[1,128], index: 13, kind: input, shape index: {}]
  %s14 = inlined_call_operand.hbm [shape: f32[8,128], index: 14, kind: output, shape index: {0}]
  %s15 = inlined_call_operand.hbm [shape: f32[8,384], index: 15, kind: output, shape index: {1}]
  %16 = xla_tuple %s14, %s15
  %s17 = sld [smem:[#allocation0]]
  $region106: #{tpu_custom_call.1} parent=0
    _
  %s19 = ssub.s32 1, %s17
  %s20 = scalar_select 0, %s19, %s17
  $region1: #{tpu_custom_call.1} parent=0
    #allocation2 [shape = 'u8[4096]{0}', space=vmem, size = 0x1000, scoped, tag = 'input window, operand 0, single buffered']
    #allocation3 [shape = 's32[1]{0}', space=sflag, size = 0x4, scoped, tag = 'scoped memory for tpu_custom_call.1']
    #allocation4 [shape = 's32[1]{0}', space=sflag, size = 0x4, scoped, tag = 'scoped memory for tpu_custom_call.1']
    #allocation5 [shape = 'u8[4096]{0}', space=vmem, size = 0x1000, scoped, tag = 'input window, operand 1, single buffered']
    #allocation6 [shape = 's32[1]{0}', space=sflag, size = 0x4, scoped, tag = 'scoped memory for tpu_custom_call.1']
    #allocation7 [shape = 'u8[32768]{0}', space=vmem, size = 0x8000, scoped, tag = 'input window, operand 2, single buffered']
    #allocation8 [shape = 'u8[32768]{0}', space=vmem, size = 0x8000, scoped, tag = 'input window, operand 4, single buffered']
    #allocation9 [shape = 's32[1]{0}', space=sflag, size = 0x4, scoped, tag = 'scoped memory for tpu_custom_call.1']
    #allocation10 [shape = 'u8[65536]{0}', space=vmem, size = 0x10000, scoped, tag = 'input window, operand 6, single buffered']
    #allocation11 [shape = 'u8[32768]{0}', space=vmem, size = 0x8000, scoped, tag = 'input window, operand 8, single buffered']
    #allocation12 [shape = 's32[1]{0}', space=sflag, size = 0x4, scoped, tag = 'scoped memory for tpu_custom_call.1']
    #allocation13 [shape = 'u8[32768]{0}', space=vmem, size = 0x8000, scoped, tag = 'input window, operand 10, single buffered']
    #allocation14 [shape = 'u8[32768]{0}', space=vmem, size = 0x8000, scoped, tag = 'input window, operand 12, single buffered']
    #allocation15 [shape = 's32[1]{0}', space=sflag, size = 0x4, scoped, tag = 'scoped memory for tpu_custom_call.1']
    #allocation16 [shape = 'u8[4096]{0}', space=vmem, size = 0x1000, scoped, tag = 'output window, operand 0, single buffered']
    #allocation17 [shape = 'u8[12288]{0}', space=vmem, size = 0x3000, scoped, tag = 'output window, operand 1, single buffered']
    #allocation18 [shape = 's32[1]{0}', space=sflag, size = 0x4, scoped, tag = 'scoped memory for tpu_custom_call.1']
    %21 = vsyncpa [#allocation3], 0
    %22 = vsyncpa [#allocation6], 0
    %23 = vsyncpa [#allocation9], 0
    %24 = vsyncpa [#allocation12], 0
    %25 = vsyncpa [#allocation15], 0
    %26 = vsyncpa [#allocation4], 0
    %27 = vsyncpa [#allocation18], 0
    // Predicated region
    $region2: #{tpu_custom_call.1} parent=1 // pred_check
      _
    $region3: #{tpu_custom_call.1} parent=1 // pred_check_branch
      %29 = sbr.rel (0) target = $region5
    $region4: #{tpu_custom_call.1} parent=1 // pred_region
      %s31 = ssub.s32 128, 128
      %32 = vsyncadd [#allocation3], %s31
      %s34 = sshll.u32 [#allocation2], 4
      %s35 = int_to_ptr.vmem [resolvable:$true] %s34
      %37 = dma.hbm_to_vmem [thread:$0]  %s0, 128, %s35, [#allocation3]
    $region5: #{tpu_custom_call.1} parent=1 // pred_fallthru
      _
    // Predicated region
    $region6: #{tpu_custom_call.1} parent=1 // pred_check
      _
    $region7: #{tpu_custom_call.1} parent=1 // pred_check_branch
      %39 = sbr.rel (0) target = $region9
    $region8: #{tpu_custom_call.1} parent=1 // pred_region
      %s41 = ssub.s32 128, 128
      %42 = vsyncadd [#allocation6], %s41
      %s44 = sshll.u32 [#allocation5], 4
      %s45 = int_to_ptr.vmem [resolvable:$true] %s44
      %47 = dma.hbm_to_vmem [thread:$0]  %s1, 128, %s45, [#allocation6]
    $region9: #{tpu_custom_call.1} parent=1 // pred_fallthru
      _
    // Predicated region
    $region10: #{tpu_custom_call.1} parent=1 // pred_check
      _
    $region11: #{tpu_custom_call.1} parent=1 // pred_check_branch
      %49 = sbr.rel (0) target = $region13
    $region12: #{tpu_custom_call.1} parent=1 // pred_region
      %s51 = ssub.s32 1024, 1024
      %52 = vsyncadd [#allocation6], %s51
      %s53 = sshll.u32 [#allocation7], 4
      %s54 = int_to_ptr.vmem [resolvable:$true] %s53
      %59 = dma.hbm_to_vmem [thread:$0]  %s2, 1024, %s54, [#allocation6], 64, 64, 4
    $region13: #{tpu_custom_call.1} parent=1 // pred_fallthru
      _
    // Predicated region
    $region14: #{tpu_custom_call.1} parent=1 // pred_check
      _
    $region15: #{tpu_custom_call.1} parent=1 // pred_check_branch
      %61 = sbr.rel (0) target = $region17
    $region16: #{tpu_custom_call.1} parent=1 // pred_region
      _
    $region17: #{tpu_custom_call.1} parent=1 // pred_fallthru
      _
    // Predicated region
    $region18: #{tpu_custom_call.1} parent=1 // pred_check
      _
    $region19: #{tpu_custom_call.1} parent=1 // pred_check_branch
      %63 = sbr.rel (0) target = $region21
    $region20: #{tpu_custom_call.1} parent=1 // pred_region
      %s65 = ssub.s32 1024, 1024
      %66 = vsyncadd [#allocation9], %s65
      %s67 = sshll.u32 [#allocation8], 4
      %s68 = int_to_ptr.vmem [resolvable:$true] %s67
      %73 = dma.hbm_to_vmem [thread:$0]  %s4, 1024, %s68, [#allocation9], 64, 64, 4
    $region21: #{tpu_custom_call.1} parent=1 // pred_fallthru
      _
    // Predicated region
    $region22: #{tpu_custom_call.1} parent=1 // pred_check
      _
    $region23: #{tpu_custom_call.1} parent=1 // pred_check_branch
      %75 = sbr.rel (0) target = $region25
    $region24: #{tpu_custom_call.1} parent=1 // pred_region
      _
    $region25: #{tpu_custom_call.1} parent=1 // pred_fallthru
      _
    // Predicated region
    $region26: #{tpu_custom_call.1} parent=1 // pred_check
      _
    $region27: #{tpu_custom_call.1} parent=1 // pred_check_branch
      %77 = sbr.rel (0) target = $region29
    $region28: #{tpu_custom_call.1} parent=1 // pred_region
      %s79 = ssub.s32 2048, 2048
      %80 = vsyncadd [#allocation9], %s79
      %s81 = sshll.u32 [#allocation10], 4
      %s82 = int_to_ptr.vmem [resolvable:$true] %s81
      %87 = dma.hbm_to_vmem [thread:$0]  %s6, 2048, %s82, [#allocation9], 128, 128, 8
    $region29: #{tpu_custom_call.1} parent=1 // pred_fallthru
      _
    // Predicated region
    $region30: #{tpu_custom_call.1} parent=1 // pred_check
      _
    $region31: #{tpu_custom_call.1} parent=1 // pred_check_branch
      %89 = sbr.rel (0) target = $region33
    $region32: #{tpu_custom_call.1} parent=1 // pred_region
      _
    $region33: #{tpu_custom_call.1} parent=1 // pred_fallthru
      _
    // Predicated region
    $region34: #{tpu_custom_call.1} parent=1 // pred_check
      _
    $region35: #{tpu_custom_call.1} parent=1 // pred_check_branch
      %91 = sbr.rel (0) target = $region37
    $region36: #{tpu_custom_call.1} parent=1 // pred_region
      %s93 = ssub.s32 1024, 1024
      %94 = vsyncadd [#allocation12], %s93
      %s95 = sshll.u32 [#allocation11], 4
      %s96 = int_to_ptr.vmem [resolvable:$true] %s95
      %101 = dma.hbm_to_vmem [thread:$0]  %s8, 1024, %s96, [#allocation12], 64, 64, 4
    $region37: #{tpu_custom_call.1} parent=1 // pred_fallthru
      _
    // Predicated region
    $region38: #{tpu_custom_call.1} parent=1 // pred_check
      _
    $region39: #{tpu_custom_call.1} parent=1 // pred_check_branch
      %103 = sbr.rel (0) target = $region41
    $region40: #{tpu_custom_call.1} parent=1 // pred_region
      _
    $region41: #{tpu_custom_call.1} parent=1 // pred_fallthru
      _
    // Predicated region
    $region42: #{tpu_custom_call.1} parent=1 // pred_check
      _
    $region43: #{tpu_custom_call.1} parent=1 // pred_check_branch
      %105 = sbr.rel (0) target = $region45
    $region44: #{tpu_custom_call.1} parent=1 // pred_region
      %s107 = ssub.s32 1024, 1024
      %108 = vsyncadd [#allocation12], %s107
      %s109 = sshll.u32 [#allocation13], 4
      %s110 = int_to_ptr.vmem [resolvable:$true] %s109
      %115 = dma.hbm_to_vmem [thread:$0]  %s10, 1024, %s110, [#allocation12], 64, 64, 4
    $region45: #{tpu_custom_call.1} parent=1 // pred_fallthru
      _
    // Predicated region
    $region46: #{tpu_custom_call.1} parent=1 // pred_check
      _
    $region47: #{tpu_custom_call.1} parent=1 // pred_check_branch
      %117 = sbr.rel (0) target = $region49
    $region48: #{tpu_custom_call.1} parent=1 // pred_region
      _
    $region49: #{tpu_custom_call.1} parent=1 // pred_fallthru
      _
    // Predicated region
    $region50: #{tpu_custom_call.1} parent=1 // pred_check
      _
    $region51: #{tpu_custom_call.1} parent=1 // pred_check_branch
      %119 = sbr.rel (0) target = $region53
    $region52: #{tpu_custom_call.1} parent=1 // pred_region
      %s121 = ssub.s32 1024, 1024
      %122 = vsyncadd [#allocation15], %s121
      %s123 = sshll.u32 [#allocation14], 4
      %s124 = int_to_ptr.vmem [resolvable:$true] %s123
      %129 = dma.hbm_to_vmem [thread:$0]  %s12, 1024, %s124, [#allocation15], 64, 64, 4
    $region53: #{tpu_custom_call.1} parent=1 // pred_fallthru
      _
    // Predicated region
    $region54: #{tpu_custom_call.1} parent=1 // pred_check
      _
    $region55: #{tpu_custom_call.1} parent=1 // pred_check_branch
      %131 = sbr.rel (0) target = $region57
    $region56: #{tpu_custom_call.1} parent=1 // pred_region
      _
    $region57: #{tpu_custom_call.1} parent=1 // pred_fallthru
      _
    // Predicated region
    $region58: #{tpu_custom_call.1} parent=1 // pred_check
      _
    $region59: #{tpu_custom_call.1} parent=1 // pred_check_branch
      %133 = sbr.rel (0) target = $region61
    $region60: #{tpu_custom_call.1} parent=1 // pred_region
      %134 = dma.done [#allocation3], 128
    $region61: #{tpu_custom_call.1} parent=1 // pred_fallthru
      _
    // Predicated region
    $region62: #{tpu_custom_call.1} parent=1 // pred_check
      _
    $region63: #{tpu_custom_call.1} parent=1 // pred_check_branch
      %136 = sbr.rel (0) target = $region65
    $region64: #{tpu_custom_call.1} parent=1 // pred_region
      %137 = dma.done [#allocation6], 128
    $region65: #{tpu_custom_call.1} parent=1 // pred_fallthru
      _
    // Predicated region
    $region66: #{tpu_custom_call.1} parent=1 // pred_check
      _
    $region67: #{tpu_custom_call.1} parent=1 // pred_check_branch
      %139 = sbr.rel (0) target = $region69
    $region68: #{tpu_custom_call.1} parent=1 // pred_region
      %140 = dma.done [#allocation6], 1024
    $region69: #{tpu_custom_call.1} parent=1 // pred_fallthru
      _
    // Predicated region
    $region70: #{tpu_custom_call.1} parent=1 // pred_check
      _
    $region71: #{tpu_custom_call.1} parent=1 // pred_check_branch
      %142 = sbr.rel (0) target = $region73
    $region72: #{tpu_custom_call.1} parent=1 // pred_region
      %143 = dma.done [#allocation9], 1024
    $region73: #{tpu_custom_call.1} parent=1 // pred_fallthru
      _
    // Predicated region
    $region74: #{tpu_custom_call.1} parent=1 // pred_check
      _
    $region75: #{tpu_custom_call.1} parent=1 // pred_check_branch
      %145 = sbr.rel (0) target = $region77
    $region76: #{tpu_custom_call.1} parent=1 // pred_region
      %146 = dma.done [#allocation9], 2048
    $region77: #{tpu_custom_call.1} parent=1 // pred_fallthru
      _
    // Predicated region
    $region78: #{tpu_custom_call.1} parent=1 // pred_check
      _
    $region79: #{tpu_custom_call.1} parent=1 // pred_check_branch
      %148 = sbr.rel (0) target = $region81
    $region80: #{tpu_custom_call.1} parent=1 // pred_region
      %149 = dma.done [#allocation12], 1024
    $region81: #{tpu_custom_call.1} parent=1 // pred_fallthru
      _
    // Predicated region
    $region82: #{tpu_custom_call.1} parent=1 // pred_check
      _
    $region83: #{tpu_custom_call.1} parent=1 // pred_check_branch
      %151 = sbr.rel (0) target = $region85
    $region84: #{tpu_custom_call.1} parent=1 // pred_region
      %152 = dma.done [#allocation12], 1024
    $region85: #{tpu_custom_call.1} parent=1 // pred_fallthru
      _
    // Predicated region
    $region86: #{tpu_custom_call.1} parent=1 // pred_check
      _
    $region87: #{tpu_custom_call.1} parent=1 // pred_check_branch
      %154 = sbr.rel (0) target = $region89
    $region88: #{tpu_custom_call.1} parent=1 // pred_region
      %155 = dma.done [#allocation15], 1024
    $region89: #{tpu_custom_call.1} parent=1 // pred_fallthru
      _
    %v157 = vld [vmem:[#allocation2] sm:$0xff]
    %v158 = vpack.c.bf16 %v157, %v157
    %v159 = vld [vmem:[#allocation7] sm:$0xf]
    %v160 = vld [vmem:[#allocation7 + $0x4] sm:$0xf]
    %v161 = vld [vmem:[#allocation7 + $0x8] sm:$0xf]
    %v162 = vld [vmem:[#allocation7 + $0xc] sm:$0xf]
    %v163 = vld [vmem:[#allocation7 + $0x10] sm:$0xf]
    %v164 = vld [vmem:[#allocation7 + $0x14] sm:$0xf]
    %v165 = vld [vmem:[#allocation7 + $0x18] sm:$0xf]
    %v166 = vld [vmem:[#allocation7 + $0x1c] sm:$0xf]
    %v167 = vld [vmem:[#allocation7 + $0x20] sm:$0xf]
    %v168 = vld [vmem:[#allocation7 + $0x24] sm:$0xf]
    %v169 = vld [vmem:[#allocation7 + $0x28] sm:$0xf]
    %v170 = vld [vmem:[#allocation7 + $0x2c] sm:$0xf]
    %v171 = vld [vmem:[#allocation7 + $0x30] sm:$0xf]
    %v172 = vld [vmem:[#allocation7 + $0x34] sm:$0xf]
    %v173 = vld [vmem:[#allocation7 + $0x38] sm:$0xf]
    %v174 = vld [vmem:[#allocation7 + $0x3c] sm:$0xf]
    %v175 = vld [vmem:[%s3] sm:$0x1]
    %v177 = vlaneseq
    %v178 = vshrl.u32 %v177, 7
    %v179 = vsub.s32 0, %v178
    %v180 = vrot.slane %v175, %v179
    %v198 = vunpack.c.l.b16 %v159
    %v199 = vunpack.c.l.b16 %v160
    %v200 = vunpack.c.l.b16 %v161
    %v201 = vunpack.c.l.b16 %v162
    %v202 = vunpack.c.l.b16 %v163
    %v203 = vunpack.c.l.b16 %v164
    %v204 = vunpack.c.l.b16 %v165
    %v205 = vunpack.c.l.b16 %v166
    %v206 = vunpack.c.l.b16 %v167
    %v207 = vunpack.c.l.b16 %v168
    %v208 = vunpack.c.l.b16 %v169
    %v209 = vunpack.c.l.b16 %v170
    %v210 = vunpack.c.l.b16 %v171
    %v211 = vunpack.c.l.b16 %v172
    %v212 = vunpack.c.l.b16 %v173
    %v213 = vunpack.c.l.b16 %v174
    %v214 = vpack.c.b16 %v199, %v198
    %v215 = vpack.c.b16 %v201, %v200
    %v216 = vpack.c.b16 %v203, %v202
    %v217 = vpack.c.b16 %v205, %v204
    %v218 = vpack.c.b16 %v207, %v206
    %v219 = vpack.c.b16 %v209, %v208
    %v220 = vpack.c.b16 %v211, %v210
    %v221 = vpack.c.b16 %v213, %v212
    %230 = vmatprep.subr.bf16.mxu0 0
    %231 = vmatpush1.bf16.msra.mxu0 %v221
    %232 = vmatprep.subr.bf16.mxu0 0
    %233 = vmatpush1.bf16.msra.mxu0 %v220
    %234 = vmatprep.subr.bf16.mxu0 0
    %235 = vmatpush1.bf16.msra.mxu0 %v219
    %236 = vmatprep.subr.bf16.mxu0 0
    %237 = vmatpush1.bf16.msra.mxu0 %v218
    %238 = vmatprep.subr.bf16.mxu0 0
    %239 = vmatpush1.bf16.msra.mxu0 %v217
    %240 = vmatprep.subr.bf16.mxu0 0
    %241 = vmatpush1.bf16.msra.mxu0 %v216
    %242 = vmatprep.subr.bf16.mxu0 0
    %243 = vmatpush1.bf16.msra.mxu0 %v215
    %244 = vmatprep.subr.bf16.mxu0 0
    %245 = vmatpush1.bf16.msra.mxu0 %v214
    %246 = vmatprep.subr.bf16.mxu0 0
    %247 = vmatpush2.bf16.msra.mxu0 0
    %248 = vmatprep.subr.bf16.mxu0 0
    %249 = vmatpush2.bf16.msra.mxu0 0
    %250 = vmatprep.subr.bf16.mxu0 0
    %251 = vmatpush2.bf16.msra.mxu0 0
    %252 = vmatprep.subr.bf16.mxu0 0
    %253 = vmatpush2.bf16.msra.mxu0 0
    %254 = vmatprep.subr.bf16.mxu0 0
    %255 = vmatpush2.bf16.msra.mxu0 0
    %256 = vmatprep.subr.bf16.mxu0 0
    %257 = vmatpush2.bf16.msra.mxu0 0
    %258 = vmatprep.subr.bf16.mxu0 0
    %259 = vmatpush2.bf16.msra.mxu0 0
    %260 = vmatprep.subr.bf16.mxu0 0
    %261 = vmatpush2.bf16.msra.mxu0 0
    %262 = vmatprep.mubr.bf16.mxu0 0
    %263 = vmatmul.mubr.bf16.gmra.mxu0 %v158
    %v264 = vpop.f32.mrf.mxu0
    %v265 = vadd.f32 %v180, %v264
    %v266 = vpop.f32.mrf.mxu0
    %v267 = vpop.f32.mrf.mxu0
    %v268 = vpop.f32.mrf.mxu0
    %269 = vdwg.mxu0
    %vm270 = vcmp.ge.f32.partialorder %v265, 0.0
    %v271 = vmul.f32 %v265, 0.2
    %v272 = vsel %vm270, %v265, %v271
    %v273 = vpack.c.bf16 %v272, %v272
    %v274 = vld [vmem:[#allocation8] sm:$0xf]
    %v275 = vld [vmem:[#allocation8 + $0x4] sm:$0xf]
    %v276 = vld [vmem:[#allocation8 + $0x8] sm:$0xf]
    %v277 = vld [vmem:[#allocation8 + $0xc] sm:$0xf]
    %v278 = vld [vmem:[#allocation8 + $0x10] sm:$0xf]
    %v279 = vld [vmem:[#allocation8 + $0x14] sm:$0xf]
    %v280 = vld [vmem:[#allocation8 + $0x18] sm:$0xf]
    %v281 = vld [vmem:[#allocation8 + $0x1c] sm:$0xf]
    %v282 = vld [vmem:[#allocation8 + $0x20] sm:$0xf]
    %v283 = vld [vmem:[#allocation8 + $0x24] sm:$0xf]
    %v284 = vld [vmem:[#allocation8 + $0x28] sm:$0xf]
    %v285 = vld [vmem:[#allocation8 + $0x2c] sm:$0xf]
    %v286 = vld [vmem:[#allocation8 + $0x30] sm:$0xf]
    %v287 = vld [vmem:[#allocation8 + $0x34] sm:$0xf]
    %v288 = vld [vmem:[#allocation8 + $0x38] sm:$0xf]
    %v289 = vld [vmem:[#allocation8 + $0x3c] sm:$0xf]
    %v290 = vld [vmem:[%s5] sm:$0x1]
    %v292 = vlaneseq
    %v293 = vshrl.u32 %v292, 7
    %v294 = vsub.s32 0, %v293
    %v295 = vrot.slane %v290, %v294
    %v313 = vunpack.c.l.b16 %v274
    %v314 = vunpack.c.l.b16 %v275
    %v315 = vunpack.c.l.b16 %v276
    %v316 = vunpack.c.l.b16 %v277
    %v317 = vunpack.c.l.b16 %v278
    %v318 = vunpack.c.l.b16 %v279
    %v319 = vunpack.c.l.b16 %v280
    %v320 = vunpack.c.l.b16 %v281
    %v321 = vunpack.c.l.b16 %v282
    %v322 = vunpack.c.l.b16 %v283
    %v323 = vunpack.c.l.b16 %v284
    %v324 = vunpack.c.l.b16 %v285
    %v325 = vunpack.c.l.b16 %v286
    %v326 = vunpack.c.l.b16 %v287
    %v327 = vunpack.c.l.b16 %v288
    %v328 = vunpack.c.l.b16 %v289
    %v329 = vpack.c.b16 %v314, %v313
    %v330 = vpack.c.b16 %v316, %v315
    %v331 = vpack.c.b16 %v318, %v317
    %v332 = vpack.c.b16 %v320, %v319
    %v333 = vpack.c.b16 %v322, %v321
    %v334 = vpack.c.b16 %v324, %v323
    %v335 = vpack.c.b16 %v326, %v325
    %v336 = vpack.c.b16 %v328, %v327
    %345 = vmatprep.subr.bf16.mxu0 0
    %346 = vmatpush1.bf16.msra.mxu0 %v336
    %347 = vmatprep.subr.bf16.mxu0 0
    %348 = vmatpush1.bf16.msra.mxu0 %v335
    %349 = vmatprep.subr.bf16.mxu0 0
    %350 = vmatpush1.bf16.msra.mxu0 %v334
    %351 = vmatprep.subr.bf16.mxu0 0
    %352 = vmatpush1.bf16.msra.mxu0 %v333
    %353 = vmatprep.subr.bf16.mxu0 0
    %354 = vmatpush1.bf16.msra.mxu0 %v332
    %355 = vmatprep.subr.bf16.mxu0 0
    %356 = vmatpush1.bf16.msra.mxu0 %v331
    %357 = vmatprep.subr.bf16.mxu0 0
    %358 = vmatpush1.bf16.msra.mxu0 %v330
    %359 = vmatprep.subr.bf16.mxu0 0
    %360 = vmatpush1.bf16.msra.mxu0 %v329
    %361 = vmatprep.subr.bf16.mxu0 0
    %362 = vmatpush2.bf16.msra.mxu0 0
    %363 = vmatprep.subr.bf16.mxu0 0
    %364 = vmatpush2.bf16.msra.mxu0 0
    %365 = vmatprep.subr.bf16.mxu0 0
    %366 = vmatpush2.bf16.msra.mxu0 0
    %367 = vmatprep.subr.bf16.mxu0 0
    %368 = vmatpush2.bf16.msra.mxu0 0
    %369 = vmatprep.subr.bf16.mxu0 0
    %370 = vmatpush2.bf16.msra.mxu0 0
    %371 = vmatprep.subr.bf16.mxu0 0
    %372 = vmatpush2.bf16.msra.mxu0 0
    %373 = vmatprep.subr.bf16.mxu0 0
    %374 = vmatpush2.bf16.msra.mxu0 0
    %375 = vmatprep.subr.bf16.mxu0 0
    %376 = vmatpush2.bf16.msra.mxu0 0
    %377 = vmatprep.mubr.bf16.mxu0 0
    %378 = vmatmul.mubr.bf16.gmra.mxu0 %v273
    %v379 = vpop.f32.mrf.mxu0
    %v380 = vadd.f32 %v295, %v379
    %v381 = vpop.f32.mrf.mxu0
    %v382 = vpop.f32.mrf.mxu0
    %v383 = vpop.f32.mrf.mxu0
    %384 = vdwg.mxu0
    %vm385 = vcmp.ge.f32.partialorder %v380, 0.0
    %v386 = vmul.f32 %v380, 0.2
    %v387 = vsel %vm385, %v380, %v386
    %v388 = vpack.c.bf16 %v387, %v387
    %v389 = vld [vmem:[#allocation10] sm:$0xff]
    %v390 = vld [vmem:[#allocation10 + $0x8] sm:$0xff]
    %v391 = vld [vmem:[#allocation10 + $0x10] sm:$0xff]
    %v392 = vld [vmem:[#allocation10 + $0x18] sm:$0xff]
    %v393 = vld [vmem:[#allocation10 + $0x20] sm:$0xff]
    %v394 = vld [vmem:[#allocation10 + $0x28] sm:$0xff]
    %v395 = vld [vmem:[#allocation10 + $0x30] sm:$0xff]
    %v396 = vld [vmem:[#allocation10 + $0x38] sm:$0xff]
    %v397 = vld [vmem:[#allocation10 + $0x40] sm:$0xff]
    %v398 = vld [vmem:[#allocation10 + $0x48] sm:$0xff]
    %v399 = vld [vmem:[#allocation10 + $0x50] sm:$0xff]
    %v400 = vld [vmem:[#allocation10 + $0x58] sm:$0xff]
    %v401 = vld [vmem:[#allocation10 + $0x60] sm:$0xff]
    %v402 = vld [vmem:[#allocation10 + $0x68] sm:$0xff]
    %v403 = vld [vmem:[#allocation10 + $0x70] sm:$0xff]
    %v404 = vld [vmem:[#allocation10 + $0x78] sm:$0xff]
    %v405 = vld [vmem:[%s7] sm:$0x3]
    %v407 = vlaneseq
    %v408 = vshrl.u32 %v407, 7
    %v409 = vsub.s32 0, %v408
    %v410 = vrot.slane %v405, %v409
    %v411 = vlaneseq
    %v412 = vshrl.u32 %v411, 7
    %v413 = vsub.s32 1, %v412
    %v414 = vrot.slane %v405, %v413
    %v433 = vunpack.c.l.b16 %v389
    %v434 = vunpack.c.h.b16 %v389
    %v435 = vunpack.c.l.b16 %v390
    %v436 = vunpack.c.h.b16 %v390
    %v437 = vunpack.c.l.b16 %v391
    %v438 = vunpack.c.h.b16 %v391
    %v439 = vunpack.c.l.b16 %v392
    %v440 = vunpack.c.h.b16 %v392
    %v441 = vunpack.c.l.b16 %v393
    %v442 = vunpack.c.h.b16 %v393
    %v443 = vunpack.c.l.b16 %v394
    %v444 = vunpack.c.h.b16 %v394
    %v445 = vunpack.c.l.b16 %v395
    %v446 = vunpack.c.h.b16 %v395
    %v447 = vunpack.c.l.b16 %v396
    %v448 = vunpack.c.h.b16 %v396
    %v449 = vunpack.c.l.b16 %v397
    %v450 = vunpack.c.h.b16 %v397
    %v451 = vunpack.c.l.b16 %v398
    %v452 = vunpack.c.h.b16 %v398
    %v453 = vunpack.c.l.b16 %v399
    %v454 = vunpack.c.h.b16 %v399
    %v455 = vunpack.c.l.b16 %v400
    %v456 = vunpack.c.h.b16 %v400
    %v457 = vunpack.c.l.b16 %v401
    %v458 = vunpack.c.h.b16 %v401
    %v459 = vunpack.c.l.b16 %v402
    %v460 = vunpack.c.h.b16 %v402
    %v461 = vunpack.c.l.b16 %v403
    %v462 = vunpack.c.h.b16 %v403
    %v463 = vunpack.c.l.b16 %v404
    %v464 = vunpack.c.h.b16 %v404
    %v465 = vpack.c.b16 %v435, %v433
    %v466 = vpack.c.b16 %v436, %v434
    %v467 = vpack.c.b16 %v439, %v437
    %v468 = vpack.c.b16 %v440, %v438
    %v469 = vpack.c.b16 %v443, %v441
    %v470 = vpack.c.b16 %v444, %v442
    %v471 = vpack.c.b16 %v447, %v445
    %v472 = vpack.c.b16 %v448, %v446
    %v473 = vpack.c.b16 %v451, %v449
    %v474 = vpack.c.b16 %v452, %v450
    %v475 = vpack.c.b16 %v455, %v453
    %v476 = vpack.c.b16 %v456, %v454
    %v477 = vpack.c.b16 %v459, %v457
    %v478 = vpack.c.b16 %v460, %v458
    %v479 = vpack.c.b16 %v463, %v461
    %v480 = vpack.c.b16 %v464, %v462
    %497 = vmatprep.subr.bf16.mxu0 %v480
    %498 = vmatpush1.bf16.msra.mxu0 %v479
    %499 = vmatprep.subr.bf16.mxu0 %v478
    %500 = vmatpush1.bf16.msra.mxu0 %v477
    %501 = vmatprep.subr.bf16.mxu0 %v476
    %502 = vmatpush1.bf16.msra.mxu0 %v475
    %503 = vmatprep.subr.bf16.mxu0 %v474
    %504 = vmatpush1.bf16.msra.mxu0 %v473
    %505 = vmatprep.subr.bf16.mxu0 %v472
    %506 = vmatpush1.bf16.msra.mxu0 %v471
    %507 = vmatprep.subr.bf16.mxu0 %v470
    %508 = vmatpush1.bf16.msra.mxu0 %v469
    %509 = vmatprep.subr.bf16.mxu0 %v468
    %510 = vmatpush1.bf16.msra.mxu0 %v467
    %511 = vmatprep.subr.bf16.mxu0 %v466
    %512 = vmatpush1.bf16.msra.mxu0 %v465
    %513 = vmatprep.subr.bf16.mxu0 0
    %514 = vmatpush2.bf16.msra.mxu0 0
    %515 = vmatprep.subr.bf16.mxu0 0
    %516 = vmatpush2.bf16.msra.mxu0 0
    %517 = vmatprep.subr.bf16.mxu0 0
    %518 = vmatpush2.bf16.msra.mxu0 0
    %519 = vmatprep.subr.bf16.mxu0 0
    %520 = vmatpush2.bf16.msra.mxu0 0
    %521 = vmatprep.subr.bf16.mxu0 0
    %522 = vmatpush2.bf16.msra.mxu0 0
    %523 = vmatprep.subr.bf16.mxu0 0
    %524 = vmatpush2.bf16.msra.mxu0 0
    %525 = vmatprep.subr.bf16.mxu0 0
    %526 = vmatpush2.bf16.msra.mxu0 0
    %527 = vmatprep.subr.bf16.mxu0 0
    %528 = vmatpush2.bf16.msra.mxu0 0
    %529 = vmatprep.mubr.bf16.mxu0 0
    %530 = vmatmul.mubr.bf16.gmra.mxu0 %v388
    %v531 = vpop.f32.mrf.mxu0
    %v532 = vadd.f32 %v410, %v531
    %v533 = vpop.f32.mrf.mxu0
    %v534 = vadd.f32 %v414, %v533
    %v535 = vpop.f32.mrf.mxu0
    %v536 = vpop.f32.mrf.mxu0
    %537 = vdwg.mxu0
    %v538 = vld [vmem:[#allocation5] sm:$0xff]
    %v539 = vmul.f32 %v534, 0.5
    %v540 = vmul.f32 %v539, 1.442695
    %v541 = vpow.pop %v540
    %v542 = vmul.f32 %v538, %v541
    %v543 = vadd.f32 %v532, %v542
    %v544 = vpack.c.bf16 %v543, %v543
    %v545 = vld [vmem:[#allocation11] sm:$0xf]
    %v546 = vld [vmem:[#allocation11 + $0x4] sm:$0xf]
    %v547 = vld [vmem:[#allocation11 + $0x8] sm:$0xf]
    %v548 = vld [vmem:[#allocation11 + $0xc] sm:$0xf]
    %v549 = vld [vmem:[#allocation11 + $0x10] sm:$0xf]
    %v550 = vld [vmem:[#allocation11 + $0x14] sm:$0xf]
    %v551 = vld [vmem:[#allocation11 + $0x18] sm:$0xf]
    %v552 = vld [vmem:[#allocation11 + $0x1c] sm:$0xf]
    %v553 = vld [vmem:[#allocation11 + $0x20] sm:$0xf]
    %v554 = vld [vmem:[#allocation11 + $0x24] sm:$0xf]
    %v555 = vld [vmem:[#allocation11 + $0x28] sm:$0xf]
    %v556 = vld [vmem:[#allocation11 + $0x2c] sm:$0xf]
    %v557 = vld [vmem:[#allocation11 + $0x30] sm:$0xf]
    %v558 = vld [vmem:[#allocation11 + $0x34] sm:$0xf]
    %v559 = vld [vmem:[#allocation11 + $0x38] sm:$0xf]
    %v560 = vld [vmem:[#allocation11 + $0x3c] sm:$0xf]
    %v561 = vld [vmem:[%s9] sm:$0x1]
    %v563 = vlaneseq
    %v564 = vshrl.u32 %v563, 7
    %v565 = vsub.s32 0, %v564
    %v566 = vrot.slane %v561, %v565
    %v584 = vunpack.c.l.b16 %v545
    %v585 = vunpack.c.l.b16 %v546
    %v586 = vunpack.c.l.b16 %v547
    %v587 = vunpack.c.l.b16 %v548
    %v588 = vunpack.c.l.b16 %v549
    %v589 = vunpack.c.l.b16 %v550
    %v590 = vunpack.c.l.b16 %v551
    %v591 = vunpack.c.l.b16 %v552
    %v592 = vunpack.c.l.b16 %v553
    %v593 = vunpack.c.l.b16 %v554
    %v594 = vunpack.c.l.b16 %v555
    %v595 = vunpack.c.l.b16 %v556
    %v596 = vunpack.c.l.b16 %v557
    %v597 = vunpack.c.l.b16 %v558
    %v598 = vunpack.c.l.b16 %v559
    %v599 = vunpack.c.l.b16 %v560
    %v600 = vpack.c.b16 %v585, %v584
    %v601 = vpack.c.b16 %v587, %v586
    %v602 = vpack.c.b16 %v589, %v588
    %v603 = vpack.c.b16 %v591, %v590
    %v604 = vpack.c.b16 %v593, %v592
    %v605 = vpack.c.b16 %v595, %v594
    %v606 = vpack.c.b16 %v597, %v596
    %v607 = vpack.c.b16 %v599, %v598
    %616 = vmatprep.subr.bf16.mxu0 0
    %617 = vmatpush1.bf16.msra.mxu0 %v607
    %618 = vmatprep.subr.bf16.mxu0 0
    %619 = vmatpush1.bf16.msra.mxu0 %v606
    %620 = vmatprep.subr.bf16.mxu0 0
    %621 = vmatpush1.bf16.msra.mxu0 %v605
    %622 = vmatprep.subr.bf16.mxu0 0
    %623 = vmatpush1.bf16.msra.mxu0 %v604
    %624 = vmatprep.subr.bf16.mxu0 0
    %625 = vmatpush1.bf16.msra.mxu0 %v603
    %626 = vmatprep.subr.bf16.mxu0 0
    %627 = vmatpush1.bf16.msra.mxu0 %v602
    %628 = vmatprep.subr.bf16.mxu0 0
    %629 = vmatpush1.bf16.msra.mxu0 %v601
    %630 = vmatprep.subr.bf16.mxu0 0
    %631 = vmatpush1.bf16.msra.mxu0 %v600
    %632 = vmatprep.subr.bf16.mxu0 0
    %633 = vmatpush2.bf16.msra.mxu0 0
    %634 = vmatprep.subr.bf16.mxu0 0
    %635 = vmatpush2.bf16.msra.mxu0 0
    %636 = vmatprep.subr.bf16.mxu0 0
    %637 = vmatpush2.bf16.msra.mxu0 0
    %638 = vmatprep.subr.bf16.mxu0 0
    %639 = vmatpush2.bf16.msra.mxu0 0
    %640 = vmatprep.subr.bf16.mxu0 0
    %641 = vmatpush2.bf16.msra.mxu0 0
    %642 = vmatprep.subr.bf16.mxu0 0
    %643 = vmatpush2.bf16.msra.mxu0 0
    %644 = vmatprep.subr.bf16.mxu0 0
    %645 = vmatpush2.bf16.msra.mxu0 0
    %646 = vmatprep.subr.bf16.mxu0 0
    %647 = vmatpush2.bf16.msra.mxu0 0
    %648 = vmatprep.mubr.bf16.mxu0 0
    %649 = vmatmul.mubr.bf16.gmra.mxu0 %v544
    %v650 = vpop.f32.mrf.mxu0
    %v651 = vadd.f32 %v566, %v650
    %v652 = vpop.f32.mrf.mxu0
    %v653 = vpop.f32.mrf.mxu0
    %v654 = vpop.f32.mrf.mxu0
    %655 = vdwg.mxu0
    %vm656 = vcmp.ge.f32.partialorder %v651, 0.0
    %v657 = vmul.f32 %v651, 0.2
    %v658 = vsel %vm656, %v651, %v657
    %v659 = vpack.c.bf16 %v658, %v658
    %v660 = vld [vmem:[#allocation13] sm:$0xf]
    %v661 = vld [vmem:[#allocation13 + $0x4] sm:$0xf]
    %v662 = vld [vmem:[#allocation13 + $0x8] sm:$0xf]
    %v663 = vld [vmem:[#allocation13 + $0xc] sm:$0xf]
    %v664 = vld [vmem:[#allocation13 + $0x10] sm:$0xf]
    %v665 = vld [vmem:[#allocation13 + $0x14] sm:$0xf]
    %v666 = vld [vmem:[#allocation13 + $0x18] sm:$0xf]
    %v667 = vld [vmem:[#allocation13 + $0x1c] sm:$0xf]
    %v668 = vld [vmem:[#allocation13 + $0x20] sm:$0xf]
    %v669 = vld [vmem:[#allocation13 + $0x24] sm:$0xf]
    %v670 = vld [vmem:[#allocation13 + $0x28] sm:$0xf]
    %v671 = vld [vmem:[#allocation13 + $0x2c] sm:$0xf]
    %v672 = vld [vmem:[#allocation13 + $0x30] sm:$0xf]
    %v673 = vld [vmem:[#allocation13 + $0x34] sm:$0xf]
    %v674 = vld [vmem:[#allocation13 + $0x38] sm:$0xf]
    %v675 = vld [vmem:[#allocation13 + $0x3c] sm:$0xf]
    %v676 = vld [vmem:[%s11] sm:$0x1]
    %v678 = vlaneseq
    %v679 = vshrl.u32 %v678, 7
    %v680 = vsub.s32 0, %v679
    %v681 = vrot.slane %v676, %v680
    %v699 = vunpack.c.l.b16 %v660
    %v700 = vunpack.c.l.b16 %v661
    %v701 = vunpack.c.l.b16 %v662
    %v702 = vunpack.c.l.b16 %v663
    %v703 = vunpack.c.l.b16 %v664
    %v704 = vunpack.c.l.b16 %v665
    %v705 = vunpack.c.l.b16 %v666
    %v706 = vunpack.c.l.b16 %v667
    %v707 = vunpack.c.l.b16 %v668
    %v708 = vunpack.c.l.b16 %v669
    %v709 = vunpack.c.l.b16 %v670
    %v710 = vunpack.c.l.b16 %v671
    %v711 = vunpack.c.l.b16 %v672
    %v712 = vunpack.c.l.b16 %v673
    %v713 = vunpack.c.l.b16 %v674
    %v714 = vunpack.c.l.b16 %v675
    %v715 = vpack.c.b16 %v700, %v699
    %v716 = vpack.c.b16 %v702, %v701
    %v717 = vpack.c.b16 %v704, %v703
    %v718 = vpack.c.b16 %v706, %v705
    %v719 = vpack.c.b16 %v708, %v707
    %v720 = vpack.c.b16 %v710, %v709
    %v721 = vpack.c.b16 %v712, %v711
    %v722 = vpack.c.b16 %v714, %v713
    %731 = vmatprep.subr.bf16.mxu0 0
    %732 = vmatpush1.bf16.msra.mxu0 %v722
    %733 = vmatprep.subr.bf16.mxu0 0
    %734 = vmatpush1.bf16.msra.mxu0 %v721
    %735 = vmatprep.subr.bf16.mxu0 0
    %736 = vmatpush1.bf16.msra.mxu0 %v720
    %737 = vmatprep.subr.bf16.mxu0 0
    %738 = vmatpush1.bf16.msra.mxu0 %v719
    %739 = vmatprep.subr.bf16.mxu0 0
    %740 = vmatpush1.bf16.msra.mxu0 %v718
    %741 = vmatprep.subr.bf16.mxu0 0
    %742 = vmatpush1.bf16.msra.mxu0 %v717
    %743 = vmatprep.subr.bf16.mxu0 0
    %744 = vmatpush1.bf16.msra.mxu0 %v716
    %745 = vmatprep.subr.bf16.mxu0 0
    %746 = vmatpush1.bf16.msra.mxu0 %v715
    %747 = vmatprep.subr.bf16.mxu0 0
    %748 = vmatpush2.bf16.msra.mxu0 0
    %749 = vmatprep.subr.bf16.mxu0 0
    %750 = vmatpush2.bf16.msra.mxu0 0
    %751 = vmatprep.subr.bf16.mxu0 0
    %752 = vmatpush2.bf16.msra.mxu0 0
    %753 = vmatprep.subr.bf16.mxu0 0
    %754 = vmatpush2.bf16.msra.mxu0 0
    %755 = vmatprep.subr.bf16.mxu0 0
    %756 = vmatpush2.bf16.msra.mxu0 0
    %757 = vmatprep.subr.bf16.mxu0 0
    %758 = vmatpush2.bf16.msra.mxu0 0
    %759 = vmatprep.subr.bf16.mxu0 0
    %760 = vmatpush2.bf16.msra.mxu0 0
    %761 = vmatprep.subr.bf16.mxu0 0
    %762 = vmatpush2.bf16.msra.mxu0 0
    %763 = vmatprep.mubr.bf16.mxu0 0
    %764 = vmatmul.mubr.bf16.gmra.mxu0 %v659
    %v765 = vpop.f32.mrf.mxu0
    %v766 = vadd.f32 %v681, %v765
    %v767 = vpop.f32.mrf.mxu0
    %v768 = vpop.f32.mrf.mxu0
    %v769 = vpop.f32.mrf.mxu0
    %770 = vdwg.mxu0
    %vm771 = vcmp.ge.f32.partialorder %v766, 0.0
    %v772 = vmul.f32 %v766, 0.2
    %v773 = vsel %vm771, %v766, %v772
    %v774 = vpack.c.bf16 %v773, %v773
    %v775 = vld [vmem:[#allocation14] sm:$0xf]
    %v776 = vld [vmem:[#allocation14 + $0x4] sm:$0xf]
    %v777 = vld [vmem:[#allocation14 + $0x8] sm:$0xf]
    %v778 = vld [vmem:[#allocation14 + $0xc] sm:$0xf]
    %v779 = vld [vmem:[#allocation14 + $0x10] sm:$0xf]
    %v780 = vld [vmem:[#allocation14 + $0x14] sm:$0xf]
    %v781 = vld [vmem:[#allocation14 + $0x18] sm:$0xf]
    %v782 = vld [vmem:[#allocation14 + $0x1c] sm:$0xf]
    %v783 = vld [vmem:[#allocation14 + $0x20] sm:$0xf]
    %v784 = vld [vmem:[#allocation14 + $0x24] sm:$0xf]
    %v785 = vld [vmem:[#allocation14 + $0x28] sm:$0xf]
    %v786 = vld [vmem:[#allocation14 + $0x2c] sm:$0xf]
    %v787 = vld [vmem:[#allocation14 + $0x30] sm:$0xf]
    %v788 = vld [vmem:[#allocation14 + $0x34] sm:$0xf]
    %v789 = vld [vmem:[#allocation14 + $0x38] sm:$0xf]
    %v790 = vld [vmem:[#allocation14 + $0x3c] sm:$0xf]
    %v791 = vld [vmem:[%s13] sm:$0x1]
    %v793 = vlaneseq
    %v794 = vshrl.u32 %v793, 7
    %v795 = vsub.s32 0, %v794
    %v796 = vrot.slane %v791, %v795
    %v814 = vunpack.c.l.b16 %v775
    %v815 = vunpack.c.l.b16 %v776
    %v816 = vunpack.c.l.b16 %v777
    %v817 = vunpack.c.l.b16 %v778
    %v818 = vunpack.c.l.b16 %v779
    %v819 = vunpack.c.l.b16 %v780
    %v820 = vunpack.c.l.b16 %v781
    %v821 = vunpack.c.l.b16 %v782
    %v822 = vunpack.c.l.b16 %v783
    %v823 = vunpack.c.l.b16 %v784
    %v824 = vunpack.c.l.b16 %v785
    %v825 = vunpack.c.l.b16 %v786
    %v826 = vunpack.c.l.b16 %v787
    %v827 = vunpack.c.l.b16 %v788
    %v828 = vunpack.c.l.b16 %v789
    %v829 = vunpack.c.l.b16 %v790
    %v830 = vpack.c.b16 %v815, %v814
    %v831 = vpack.c.b16 %v817, %v816
    %v832 = vpack.c.b16 %v819, %v818
    %v833 = vpack.c.b16 %v821, %v820
    %v834 = vpack.c.b16 %v823, %v822
    %v835 = vpack.c.b16 %v825, %v824
    %v836 = vpack.c.b16 %v827, %v826
    %v837 = vpack.c.b16 %v829, %v828
    %846 = vmatprep.subr.bf16.mxu0 0
    %847 = vmatpush1.bf16.msra.mxu0 %v837
    %848 = vmatprep.subr.bf16.mxu0 0
    %849 = vmatpush1.bf16.msra.mxu0 %v836
    %850 = vmatprep.subr.bf16.mxu0 0
    %851 = vmatpush1.bf16.msra.mxu0 %v835
    %852 = vmatprep.subr.bf16.mxu0 0
    %853 = vmatpush1.bf16.msra.mxu0 %v834
    %854 = vmatprep.subr.bf16.mxu0 0
    %855 = vmatpush1.bf16.msra.mxu0 %v833
    %856 = vmatprep.subr.bf16.mxu0 0
    %857 = vmatpush1.bf16.msra.mxu0 %v832
    %858 = vmatprep.subr.bf16.mxu0 0
    %859 = vmatpush1.bf16.msra.mxu0 %v831
    %860 = vmatprep.subr.bf16.mxu0 0
    %861 = vmatpush1.bf16.msra.mxu0 %v830
    %862 = vmatprep.subr.bf16.mxu0 0
    %863 = vmatpush2.bf16.msra.mxu0 0
    %864 = vmatprep.subr.bf16.mxu0 0
    %865 = vmatpush2.bf16.msra.mxu0 0
    %866 = vmatprep.subr.bf16.mxu0 0
    %867 = vmatpush2.bf16.msra.mxu0 0
    %868 = vmatprep.subr.bf16.mxu0 0
    %869 = vmatpush2.bf16.msra.mxu0 0
    %870 = vmatprep.subr.bf16.mxu0 0
    %871 = vmatpush2.bf16.msra.mxu0 0
    %872 = vmatprep.subr.bf16.mxu0 0
    %873 = vmatpush2.bf16.msra.mxu0 0
    %874 = vmatprep.subr.bf16.mxu0 0
    %875 = vmatpush2.bf16.msra.mxu0 0
    %876 = vmatprep.subr.bf16.mxu0 0
    %877 = vmatpush2.bf16.msra.mxu0 0
    %878 = vmatprep.mubr.bf16.mxu0 0
    %879 = vmatmul.mubr.bf16.gmra.mxu0 %v774
    %v880 = vpop.f32.mrf.mxu0
    %v881 = vadd.f32 %v796, %v880
    %v882 = vpop.f32.mrf.mxu0
    %v883 = vpop.f32.mrf.mxu0
    %v884 = vpop.f32.mrf.mxu0
    %885 = vdwg.mxu0
    %v886 = vtanh.pop %v881
    %887 = vst [vmem:[#allocation16] sm:$0xff] %v886
    %888 = vst [vmem:[#allocation17] sm:$0xff] %v532
    %889 = vst [vmem:[#allocation17 + $0x8] sm:$0xff] %v534
    %890 = vst [vmem:[#allocation17 + $0x10] sm:$0xff] %v543
    // Predicated region
    $region90: #{tpu_custom_call.1} parent=1 // pred_check
      _
    $region91: #{tpu_custom_call.1} parent=1 // pred_check_branch
      %892 = sbr.rel (0) target = $region93
    $region92: #{tpu_custom_call.1} parent=1 // pred_region
      %s894 = ssub.s32 128, 128
      %895 = vsyncadd [#allocation4], %s894
      %s897 = sshll.u32 [#allocation16], 4
      %s898 = int_to_ptr.vmem [resolvable:$true] %s897
      %900 = dma.vmem_to_hbm [thread:$0]  %s898, 128, %s14, [#allocation4]
    $region93: #{tpu_custom_call.1} parent=1 // pred_fallthru
      _
    // Predicated region
    $region94: #{tpu_custom_call.1} parent=1 // pred_check
      _
    $region95: #{tpu_custom_call.1} parent=1 // pred_check_branch
      %902 = sbr.rel (0) target = $region97
    $region96: #{tpu_custom_call.1} parent=1 // pred_region
      %s904 = ssub.s32 384, 384
      %905 = vsyncadd [#allocation18], %s904
      %s907 = sshll.u32 [#allocation17], 4
      %s908 = int_to_ptr.vmem [resolvable:$true] %s907
      %910 = dma.vmem_to_hbm [thread:$0]  %s908, 384, %s15, [#allocation18]
    $region97: #{tpu_custom_call.1} parent=1 // pred_fallthru
      _
    // Predicated region
    $region98: #{tpu_custom_call.1} parent=1 // pred_check
      _
    $region99: #{tpu_custom_call.1} parent=1 // pred_check_branch
      %912 = sbr.rel (0) target = $region101
    $region100: #{tpu_custom_call.1} parent=1 // pred_region
      %913 = dma.done [#allocation4], 128
    $region101: #{tpu_custom_call.1} parent=1 // pred_fallthru
      _
    // Predicated region
    $region102: #{tpu_custom_call.1} parent=1 // pred_check
      _
    $region103: #{tpu_custom_call.1} parent=1 // pred_check_branch
      %915 = sbr.rel (0) target = $region105
    $region104: #{tpu_custom_call.1} parent=1 // pred_region
      %916 = dma.done [#allocation18], 384
    $region105: #{tpu_custom_call.1} parent=1 // pred_fallthru
      _
    %917 = vsyncpa [#allocation3], 1
    %918 = vsyncpa [#allocation6], 1
    %919 = vsyncpa [#allocation9], 1
    %920 = vsyncpa [#allocation12], 1
    %921 = vsyncpa [#allocation15], 1
    %922 = vsyncpa [#allocation4], 1
    %923 = vsyncpa [#allocation18], 1

</llo_original>
